<compile_context>
chip_gen: v7x
topology: tpu7x:2x2x1
jax: 0.10.0
libtpu: 0.0.40
codegen_flags: <defaults>
</compile_context>

<pallas_src>
import jax
import jax.numpy as jnp
from jax.experimental import pallas as pl
from jax.experimental.pallas import tpu as pltpu


def _lstm_kernel(x_ref,
                 wih0_ref, whh0_ref, b0_ref,
                 w1_ref, b1_ref,
                 wlin_ref, blin_ref,
                 out_ref):
    """2-layer LSTM over the whole sequence + final Linear, batch=1.

    Gate column order inside this kernel: [i, f, o, g] (permuted host-side).
    Dropout between LSTM layers is a training-time op only -> omitted.
    """
    # TODO(synk): inter-layer dropout (p=0.1) is training-only in nn.LSTM; not applied here.
    seq = x_ref.shape[0]
    H = whh0_ref.shape[0]

    whh0 = whh0_ref[...]          # (H, 4H)
    w1 = w1_ref[...]              # (2H, 4H)  stacked [W_ih1; W_hh1]
    b1 = b1_ref[...]              # (1, 4H)

    # Hoisted layer-0 input projection: one (seq, in) x (in, 4H) matmul + bias,
    # removes a K=1 matmul from every step of the serial recurrence.
    xproj = (jnp.dot(x_ref[...], wih0_ref[...],
                     preferred_element_type=jnp.float32) + b0_ref[...])   # (seq, 4H)

    def activate(gates):
        # gate order [i, f, o, g]: one sigmoid over 3H lanes, one tanh over H lanes.
        sg = jax.nn.sigmoid(gates[:, :3 * H])
        return (sg[:, 0 * H:1 * H],        # i
                sg[:, 1 * H:2 * H],        # f
                sg[:, 2 * H:3 * H],        # o
                jnp.tanh(gates[:, 3 * H:4 * H]))  # g

    h0 = c0 = h1 = c1 = jnp.zeros((1, H), jnp.float32)

    # seq is a static Python int -> full unroll so the scheduler can overlap
    # layer-1 of step t with layer-0 of step t+1.
    for t in range(seq):
        # ----- layer 0: only the recurrent matmul remains on the critical path -----
        g0 = xproj[t:t + 1, :] + jnp.dot(h0, whh0,
                                         preferred_element_type=jnp.float32)
        i0, f0, o0, gg0 = activate(g0)
        c0 = f0 * c0 + i0 * gg0
        h0 = o0 * jnp.tanh(c0)

        # ----- layer 1: fused input+recurrent matmul, K = 2H = 128 lanes -----
        hcat = jnp.concatenate([h0, h1], axis=1)               # (1, 2H)
        g1 = jnp.dot(hcat, w1, preferred_element_type=jnp.float32) + b1
        i1, f1, o1, gg1 = activate(g1)
        c1 = f1 * c1 + i1 * gg1
        h1 = o1 * jnp.tanh(c1)

    # final Linear on last hidden state of the top layer
    out_ref[...] = (jnp.dot(h1, wlin_ref[...],
                            preferred_element_type=jnp.float32) + blin_ref[...])


def lstm_forward(x, packed_params):
    """x: (seq, input_dim) float32.  Returns (output_dim,) — matches `out[-1]`."""
    (wih0, whh0, b0, w1, b1, wlin, blin) = packed_params
    out_dim = wlin.shape[1]
    vmem = pl.BlockSpec(memory_space=pltpu.MemorySpace.VMEM)
    out = pl.pallas_call(
        _lstm_kernel,
        out_shape=jax.ShapeDtypeStruct((1, out_dim), jnp.float32),
        in_specs=[vmem] * 8,
        out_specs=vmem,
    )(x, wih0, whh0, b0, w1, b1, wlin, blin)
    return out[-1]                                             # shape (output_dim,)


def init_torch_params(key, input_dim=1, hidden_dim=64, output_dim=1):
    """Deterministic init mimicking PyTorch nn.LSTM / nn.Linear parameter shapes."""
    H = hidden_dim
    k = 1.0 / jnp.sqrt(H)
    keys = jax.random.split(key, 10)

    def u(kk, shape):
        return jax.random.uniform(kk, shape, jnp.float32, -k, k)

    return dict(
        w_ih_l0=u(keys[0], (4 * H, input_dim)),
        w_hh_l0=u(keys[1], (4 * H, H)),
        b_ih_l0=u(keys[2], (4 * H,)),
        b_hh_l0=u(keys[3], (4 * H,)),
        w_ih_l1=u(keys[4], (4 * H, H)),
        w_hh_l1=u(keys[5], (4 * H, H)),
        b_ih_l1=u(keys[6], (4 * H,)),
        b_hh_l1=u(keys[7], (4 * H,)),
        w_lin=u(keys[8], (output_dim, H)),
        b_lin=u(keys[9], (output_dim,)),
    )


def pack_params(p):
    """PyTorch-layout params -> kernel layout (transposed, gate-permuted, stacked, bias-summed)."""
    H = p["w_hh_l0"].shape[1]
    # PyTorch gate row order is [i, f, g, o]; kernel column order is [i, f, o, g].
    perm = jnp.concatenate([jnp.arange(0, H), jnp.arange(H, 2 * H),
                            jnp.arange(3 * H, 4 * H), jnp.arange(2 * H, 3 * H)])

    def cols(w_t):           # apply the gate permutation to the 4H output columns
        return w_t[:, perm]

    wih0 = cols(p["w_ih_l0"].T)                                        # (in, 4H)
    whh0 = cols(p["w_hh_l0"].T)                                        # (H, 4H)
    b0 = cols((p["b_ih_l0"] + p["b_hh_l0"])[None, :])                  # (1, 4H)
    w1 = cols(jnp.concatenate([p["w_ih_l1"].T, p["w_hh_l1"].T], 0))    # (2H, 4H)
    b1 = cols((p["b_ih_l1"] + p["b_hh_l1"])[None, :])                  # (1, 4H)
    wlin = p["w_lin"].T                                                # (H, out)
    blin = p["b_lin"][None, :]                                         # (1, out)
    return (wih0, whh0, b0, w1, b1, wlin, blin)


def _reference(x, p):
    """Pure-JAX reference of the PyTorch forward (original gate order), for correctness."""
    H = p["w_hh_l0"].shape[1]

    def cell(x_row, h, c, w_ih, w_hh, b_ih, b_hh):
        g = x_row @ w_ih.T + h @ w_hh.T + b_ih + b_hh
        i = jax.nn.sigmoid(g[:, :H]); f = jax.nn.sigmoid(g[:, H:2 * H])
        gg = jnp.tanh(g[:, 2 * H:3 * H]); o = jax.nn.sigmoid(g[:, 3 * H:])
        c = f * c + i * gg
        return o * jnp.tanh(c), c

    z = jnp.zeros((1, H), jnp.float32)
    h0, c0, h1, c1 = z, z, z, z
    for t in range(x.shape[0]):
        h0, c0 = cell(x[t:t + 1], h0, c0,
                      p["w_ih_l0"], p["w_hh_l0"], p["b_ih_l0"], p["b_hh_l0"])
        h1, c1 = cell(h0, h1, c1,
                      p["w_ih_l1"], p["w_hh_l1"], p["b_ih_l1"], p["b_hh_l1"])
    return (h1 @ p["w_lin"].T + p["b_lin"][None, :])[-1]


if __name__ == "__main__":
    key = jax.random.PRNGKey(0)
    k_param, k_x = jax.random.split(key)

    seq, input_dim, hidden_dim, output_dim = 8, 1, 64, 1
    torch_params = init_torch_params(k_param, input_dim, hidden_dim, output_dim)
    packed = pack_params(torch_params)
    x = jax.random.normal(k_x, (seq, input_dim), jnp.float32)

    out = lstm_forward(x, packed)
    out = jax.block_until_ready(out)

    ref = _reference(x, torch_params)
    assert out.shape == (output_dim,)
    assert jnp.allclose(out, ref, atol=1e-4, rtol=1e-4), (out, ref)

    print("KERNEL_OK")
</pallas_src>

<mosaic_0001>
module attributes {stable_mosaic.version = 11 : i64} {
  func.func @_lstm_kernel(%arg0: memref<8x1xf32, #tpu.memory_space<vmem>>, %arg1: memref<1x256xf32, #tpu.memory_space<vmem>>, %arg2: memref<64x256xf32, #tpu.memory_space<vmem>>, %arg3: memref<1x256xf32, #tpu.memory_space<vmem>>, %arg4: memref<128x256xf32, #tpu.memory_space<vmem>>, %arg5: memref<1x256xf32, #tpu.memory_space<vmem>>, %arg6: memref<64x1xf32, #tpu.memory_space<vmem>>, %arg7: memref<1x1xf32, #tpu.memory_space<vmem>>, %arg8: memref<1x1xf32, #tpu.memory_space<vmem>>) attributes {dimension_semantics = [], scalar_prefetch = 0 : i64, scratch_operands = 0 : i64, tpu.core_type = #tpu.core_type<tc>} {
    %c0 = arith.constant 0 : index
    %c0_0 = arith.constant 0 : index
    %0 = vector.load %arg2[%c0, %c0_0] : memref<64x256xf32, #tpu.memory_space<vmem>>, vector<64x256xf32>
    %c0_1 = arith.constant 0 : index
    %c0_2 = arith.constant 0 : index
    %1 = vector.load %arg4[%c0_1, %c0_2] : memref<128x256xf32, #tpu.memory_space<vmem>>, vector<128x256xf32>
    %c0_3 = arith.constant 0 : index
    %c0_4 = arith.constant 0 : index
    %2 = vector.load %arg5[%c0_3, %c0_4] : memref<1x256xf32, #tpu.memory_space<vmem>>, vector<1x256xf32>
    %c0_5 = arith.constant 0 : index
    %c0_6 = arith.constant 0 : index
    %3 = vector.load %arg0[%c0_5, %c0_6] : memref<8x1xf32, #tpu.memory_space<vmem>>, vector<8x1xf32>
    %c0_7 = arith.constant 0 : index
    %c0_8 = arith.constant 0 : index
    %4 = vector.load %arg1[%c0_7, %c0_8] : memref<1x256xf32, #tpu.memory_space<vmem>>, vector<1x256xf32>
    %cst = arith.constant dense<0.000000e+00> : vector<8x256xf32>
    %5 = tpu.matmul %3, %4, %cst {dimension_numbers = #tpu.dot_dimension_numbers<[1], [0], [0], [1], [0, 0, 1, 1], [], []>} : vector<8x1xf32>, vector<1x256xf32>, vector<8x256xf32> -> vector<8x256xf32>
    %c0_9 = arith.constant 0 : index
    %c0_10 = arith.constant 0 : index
    %6 = vector.load %arg3[%c0_9, %c0_10] : memref<1x256xf32, #tpu.memory_space<vmem>>, vector<1x256xf32>
    %7 = vector.broadcast %6 : vector<1x256xf32> to vector<8x256xf32>
    %8 = arith.addf %5, %7 : vector<8x256xf32>
    %cst_11 = arith.constant 0.000000e+00 : f32
    %9 = vector.broadcast %cst_11 : f32 to vector<1x64xf32>
    %10 = vector.extract_strided_slice %8 {offsets = [0, 0], sizes = [1, 256], strides = [1, 1]} : vector<8x256xf32> to vector<1x256xf32>
    %cst_12 = arith.constant dense<0.000000e+00> : vector<1x256xf32>
    %11 = tpu.matmul %9, %0, %cst_12 {dimension_numbers = #tpu.dot_dimension_numbers<[1], [0], [0], [1], [0, 0, 1, 1], [], []>} : vector<1x64xf32>, vector<64x256xf32>, vector<1x256xf32> -> vector<1x256xf32>
    %12 = arith.addf %10, %11 : vector<1x256xf32>
    %13 = vector.extract_strided_slice %12 {offsets = [0, 0], sizes = [1, 192], strides = [1, 1]} : vector<1x256xf32> to vector<1x192xf32>
    %14 = arith.negf %13 : vector<1x192xf32>
    %15 = math.exp %14 : vector<1x192xf32>
    %cst_13 = arith.constant 1.000000e+00 : f32
    %16 = vector.broadcast %cst_13 : f32 to vector<1x192xf32>
    %17 = arith.addf %16, %15 : vector<1x192xf32>
    %18 = arith.divf %16, %17 : vector<1x192xf32>
    %19 = vector.extract_strided_slice %18 {offsets = [0, 0], sizes = [1, 64], strides = [1, 1]} : vector<1x192xf32> to vector<1x64xf32>
    %20 = vector.extract_strided_slice %18 {offsets = [0, 64], sizes = [1, 64], strides = [1, 1]} : vector<1x192xf32> to vector<1x64xf32>
    %21 = vector.extract_strided_slice %18 {offsets = [0, 128], sizes = [1, 64], strides = [1, 1]} : vector<1x192xf32> to vector<1x64xf32>
    %22 = vector.extract_strided_slice %12 {offsets = [0, 192], sizes = [1, 64], strides = [1, 1]} : vector<1x256xf32> to vector<1x64xf32>
    %23 = math.tanh %22 : vector<1x64xf32>
    %24 = arith.mulf %20, %9 : vector<1x64xf32>
    %25 = arith.mulf %19, %23 : vector<1x64xf32>
    %26 = arith.addf %24, %25 : vector<1x64xf32>
    %27 = math.tanh %26 : vector<1x64xf32>
    %28 = arith.mulf %21, %27 : vector<1x64xf32>
    %29 = tpu.concatenate %28, %9 in 1 : vector<1x64xf32>, vector<1x64xf32> -> vector<1x128xf32>
    %cst_14 = arith.constant dense<0.000000e+00> : vector<1x256xf32>
    %30 = tpu.matmul %29, %1, %cst_14 {dimension_numbers = #tpu.dot_dimension_numbers<[1], [0], [0], [1], [0, 0, 1, 1], [], []>} : vector<1x128xf32>, vector<128x256xf32>, vector<1x256xf32> -> vector<1x256xf32>
    %31 = arith.addf %30, %2 : vector<1x256xf32>
    %32 = vector.extract_strided_slice %31 {offsets = [0, 0], sizes = [1, 192], strides = [1, 1]} : vector<1x256xf32> to vector<1x192xf32>
    %33 = arith.negf %32 : vector<1x192xf32>
    %34 = math.exp %33 : vector<1x192xf32>
    %cst_15 = arith.constant 1.000000e+00 : f32
    %35 = vector.broadcast %cst_15 : f32 to vector<1x192xf32>
    %36 = arith.addf %35, %34 : vector<1x192xf32>
    %37 = arith.divf %35, %36 : vector<1x192xf32>
    %38 = vector.extract_strided_slice %37 {offsets = [0, 0], sizes = [1, 64], strides = [1, 1]} : vector<1x192xf32> to vector<1x64xf32>
    %39 = vector.extract_strided_slice %37 {offsets = [0, 64], sizes = [1, 64], strides = [1, 1]} : vector<1x192xf32> to vector<1x64xf32>
    %40 = vector.extract_strided_slice %37 {offsets = [0, 128], sizes = [1, 64], strides = [1, 1]} : vector<1x192xf32> to vector<1x64xf32>
    %41 = vector.extract_strided_slice %31 {offsets = [0, 192], sizes = [1, 64], strides = [1, 1]} : vector<1x256xf32> to vector<1x64xf32>
    %42 = math.tanh %41 : vector<1x64xf32>
    %43 = arith.mulf %39, %9 : vector<1x64xf32>
    %44 = arith.mulf %38, %42 : vector<1x64xf32>
    %45 = arith.addf %43, %44 : vector<1x64xf32>
    %46 = math.tanh %45 : vector<1x64xf32>
    %47 = arith.mulf %40, %46 : vector<1x64xf32>
    %48 = vector.extract_strided_slice %8 {offsets = [1, 0], sizes = [1, 256], strides = [1, 1]} : vector<8x256xf32> to vector<1x256xf32>
    %cst_16 = arith.constant dense<0.000000e+00> : vector<1x256xf32>
    %49 = tpu.matmul %28, %0, %cst_16 {dimension_numbers = #tpu.dot_dimension_numbers<[1], [0], [0], [1], [0, 0, 1, 1], [], []>} : vector<1x64xf32>, vector<64x256xf32>, vector<1x256xf32> -> vector<1x256xf32>
    %50 = arith.addf %48, %49 : vector<1x256xf32>
    %51 = vector.extract_strided_slice %50 {offsets = [0, 0], sizes = [1, 192], strides = [1, 1]} : vector<1x256xf32> to vector<1x192xf32>
    %52 = arith.negf %51 : vector<1x192xf32>
    %53 = math.exp %52 : vector<1x192xf32>
    %cst_17 = arith.constant 1.000000e+00 : f32
    %54 = vector.broadcast %cst_17 : f32 to vector<1x192xf32>
    %55 = arith.addf %54, %53 : vector<1x192xf32>
    %56 = arith.divf %54, %55 : vector<1x192xf32>
    %57 = vector.extract_strided_slice %56 {offsets = [0, 0], sizes = [1, 64], strides = [1, 1]} : vector<1x192xf32> to vector<1x64xf32>
    %58 = vector.extract_strided_slice %56 {offsets = [0, 64], sizes = [1, 64], strides = [1, 1]} : vector<1x192xf32> to vector<1x64xf32>
    %59 = vector.extract_strided_slice %56 {offsets = [0, 128], sizes = [1, 64], strides = [1, 1]} : vector<1x192xf32> to vector<1x64xf32>
    %60 = vector.extract_strided_slice %50 {offsets = [0, 192], sizes = [1, 64], strides = [1, 1]} : vector<1x256xf32> to vector<1x64xf32>
    %61 = math.tanh %60 : vector<1x64xf32>
    %62 = arith.mulf %58, %26 : vector<1x64xf32>
    %63 = arith.mulf %57, %61 : vector<1x64xf32>
    %64 = arith.addf %62, %63 : vector<1x64xf32>
    %65 = math.tanh %64 : vector<1x64xf32>
    %66 = arith.mulf %59, %65 : vector<1x64xf32>
    %67 = tpu.concatenate %66, %47 in 1 : vector<1x64xf32>, vector<1x64xf32> -> vector<1x128xf32>
    %cst_18 = arith.constant dense<0.000000e+00> : vector<1x256xf32>
    %68 = tpu.matmul %67, %1, %cst_18 {dimension_numbers = #tpu.dot_dimension_numbers<[1], [0], [0], [1], [0, 0, 1, 1], [], []>} : vector<1x128xf32>, vector<128x256xf32>, vector<1x256xf32> -> vector<1x256xf32>
    %69 = arith.addf %68, %2 : vector<1x256xf32>
    %70 = vector.extract_strided_slice %69 {offsets = [0, 0], sizes = [1, 192], strides = [1, 1]} : vector<1x256xf32> to vector<1x192xf32>
    %71 = arith.negf %70 : vector<1x192xf32>
    %72 = math.exp %71 : vector<1x192xf32>
    %cst_19 = arith.constant 1.000000e+00 : f32
    %73 = vector.broadcast %cst_19 : f32 to vector<1x192xf32>
    %74 = arith.addf %73, %72 : vector<1x192xf32>
    %75 = arith.divf %73, %74 : vector<1x192xf32>
    %76 = vector.extract_strided_slice %75 {offsets = [0, 0], sizes = [1, 64], strides = [1, 1]} : vector<1x192xf32> to vector<1x64xf32>
    %77 = vector.extract_strided_slice %75 {offsets = [0, 64], sizes = [1, 64], strides = [1, 1]} : vector<1x192xf32> to vector<1x64xf32>
    %78 = vector.extract_strided_slice %75 {offsets = [0, 128], sizes = [1, 64], strides = [1, 1]} : vector<1x192xf32> to vector<1x64xf32>
    %79 = vector.extract_strided_slice %69 {offsets = [0, 192], sizes = [1, 64], strides = [1, 1]} : vector<1x256xf32> to vector<1x64xf32>
    %80 = math.tanh %79 : vector<1x64xf32>
    %81 = arith.mulf %77, %45 : vector<1x64xf32>
    %82 = arith.mulf %76, %80 : vector<1x64xf32>
    %83 = arith.addf %81, %82 : vector<1x64xf32>
    %84 = math.tanh %83 : vector<1x64xf32>
    %85 = arith.mulf %78, %84 : vector<1x64xf32>
    %86 = vector.extract_strided_slice %8 {offsets = [2, 0], sizes = [1, 256], strides = [1, 1]} : vector<8x256xf32> to vector<1x256xf32>
    %cst_20 = arith.constant dense<0.000000e+00> : vector<1x256xf32>
    %87 = tpu.matmul %66, %0, %cst_20 {dimension_numbers = #tpu.dot_dimension_numbers<[1], [0], [0], [1], [0, 0, 1, 1], [], []>} : vector<1x64xf32>, vector<64x256xf32>, vector<1x256xf32> -> vector<1x256xf32>
    %88 = arith.addf %86, %87 : vector<1x256xf32>
    %89 = vector.extract_strided_slice %88 {offsets = [0, 0], sizes = [1, 192], strides = [1, 1]} : vector<1x256xf32> to vector<1x192xf32>
    %90 = arith.negf %89 : vector<1x192xf32>
    %91 = math.exp %90 : vector<1x192xf32>
    %cst_21 = arith.constant 1.000000e+00 : f32
    %92 = vector.broadcast %cst_21 : f32 to vector<1x192xf32>
    %93 = arith.addf %92, %91 : vector<1x192xf32>
    %94 = arith.divf %92, %93 : vector<1x192xf32>
    %95 = vector.extract_strided_slice %94 {offsets = [0, 0], sizes = [1, 64], strides = [1, 1]} : vector<1x192xf32> to vector<1x64xf32>
    %96 = vector.extract_strided_slice %94 {offsets = [0, 64], sizes = [1, 64], strides = [1, 1]} : vector<1x192xf32> to vector<1x64xf32>
    %97 = vector.extract_strided_slice %94 {offsets = [0, 128], sizes = [1, 64], strides = [1, 1]} : vector<1x192xf32> to vector<1x64xf32>
    %98 = vector.extract_strided_slice %88 {offsets = [0, 192], sizes = [1, 64], strides = [1, 1]} : vector<1x256xf32> to vector<1x64xf32>
    %99 = math.tanh %98 : vector<1x64xf32>
    %100 = arith.mulf %96, %64 : vector<1x64xf32>
    %101 = arith.mulf %95, %99 : vector<1x64xf32>
    %102 = arith.addf %100, %101 : vector<1x64xf32>
    %103 = math.tanh %102 : vector<1x64xf32>
    %104 = arith.mulf %97, %103 : vector<1x64xf32>
    %105 = tpu.concatenate %104, %85 in 1 : vector<1x64xf32>, vector<1x64xf32> -> vector<1x128xf32>
    %cst_22 = arith.constant dense<0.000000e+00> : vector<1x256xf32>
    %106 = tpu.matmul %105, %1, %cst_22 {dimension_numbers = #tpu.dot_dimension_numbers<[1], [0], [0], [1], [0, 0, 1, 1], [], []>} : vector<1x128xf32>, vector<128x256xf32>, vector<1x256xf32> -> vector<1x256xf32>
    %107 = arith.addf %106, %2 : vector<1x256xf32>
    %108 = vector.extract_strided_slice %107 {offsets = [0, 0], sizes = [1, 192], strides = [1, 1]} : vector<1x256xf32> to vector<1x192xf32>
    %109 = arith.negf %108 : vector<1x192xf32>
    %110 = math.exp %109 : vector<1x192xf32>
    %cst_23 = arith.constant 1.000000e+00 : f32
    %111 = vector.broadcast %cst_23 : f32 to vector<1x192xf32>
    %112 = arith.addf %111, %110 : vector<1x192xf32>
    %113 = arith.divf %111, %112 : vector<1x192xf32>
    %114 = vector.extract_strided_slice %113 {offsets = [0, 0], sizes = [1, 64], strides = [1, 1]} : vector<1x192xf32> to vector<1x64xf32>
    %115 = vector.extract_strided_slice %113 {offsets = [0, 64], sizes = [1, 64], strides = [1, 1]} : vector<1x192xf32> to vector<1x64xf32>
    %116 = vector.extract_strided_slice %113 {offsets = [0, 128], sizes = [1, 64], strides = [1, 1]} : vector<1x192xf32> to vector<1x64xf32>
    %117 = vector.extract_strided_slice %107 {offsets = [0, 192], sizes = [1, 64], strides = [1, 1]} : vector<1x256xf32> to vector<1x64xf32>
    %118 = math.tanh %117 : vector<1x64xf32>
    %119 = arith.mulf %115, %83 : vector<1x64xf32>
    %120 = arith.mulf %114, %118 : vector<1x64xf32>
    %121 = arith.addf %119, %120 : vector<1x64xf32>
    %122 = math.tanh %121 : vector<1x64xf32>
    %123 = arith.mulf %116, %122 : vector<1x64xf32>
    %124 = vector.extract_strided_slice %8 {offsets = [3, 0], sizes = [1, 256], strides = [1, 1]} : vector<8x256xf32> to vector<1x256xf32>
    %cst_24 = arith.constant dense<0.000000e+00> : vector<1x256xf32>
    %125 = tpu.matmul %104, %0, %cst_24 {dimension_numbers = #tpu.dot_dimension_numbers<[1], [0], [0], [1], [0, 0, 1, 1], [], []>} : vector<1x64xf32>, vector<64x256xf32>, vector<1x256xf32> -> vector<1x256xf32>
    %126 = arith.addf %124, %125 : vector<1x256xf32>
    %127 = vector.extract_strided_slice %126 {offsets = [0, 0], sizes = [1, 192], strides = [1, 1]} : vector<1x256xf32> to vector<1x192xf32>
    %128 = arith.negf %127 : vector<1x192xf32>
    %129 = math.exp %128 : vector<1x192xf32>
    %cst_25 = arith.constant 1.000000e+00 : f32
    %130 = vector.broadcast %cst_25 : f32 to vector<1x192xf32>
    %131 = arith.addf %130, %129 : vector<1x192xf32>
    %132 = arith.divf %130, %131 : vector<1x192xf32>
    %133 = vector.extract_strided_slice %132 {offsets = [0, 0], sizes = [1, 64], strides = [1, 1]} : vector<1x192xf32> to vector<1x64xf32>
    %134 = vector.extract_strided_slice %132 {offsets = [0, 64], sizes = [1, 64], strides = [1, 1]} : vector<1x192xf32> to vector<1x64xf32>
    %135 = vector.extract_strided_slice %132 {offsets = [0, 128], sizes = [1, 64], strides = [1, 1]} : vector<1x192xf32> to vector<1x64xf32>
    %136 = vector.extract_strided_slice %126 {offsets = [0, 192], sizes = [1, 64], strides = [1, 1]} : vector<1x256xf32> to vector<1x64xf32>
    %137 = math.tanh %136 : vector<1x64xf32>
    %138 = arith.mulf %134, %102 : vector<1x64xf32>
    %139 = arith.mulf %133, %137 : vector<1x64xf32>
    %140 = arith.addf %138, %139 : vector<1x64xf32>
    %141 = math.tanh %140 : vector<1x64xf32>
    %142 = arith.mulf %135, %141 : vector<1x64xf32>
    %143 = tpu.concatenate %142, %123 in 1 : vector<1x64xf32>, vector<1x64xf32> -> vector<1x128xf32>
    %cst_26 = arith.constant dense<0.000000e+00> : vector<1x256xf32>
    %144 = tpu.matmul %143, %1, %cst_26 {dimension_numbers = #tpu.dot_dimension_numbers<[1], [0], [0], [1], [0, 0, 1, 1], [], []>} : vector<1x128xf32>, vector<128x256xf32>, vector<1x256xf32> -> vector<1x256xf32>
    %145 = arith.addf %144, %2 : vector<1x256xf32>
    %146 = vector.extract_strided_slice %145 {offsets = [0, 0], sizes = [1, 192], strides = [1, 1]} : vector<1x256xf32> to vector<1x192xf32>
    %147 = arith.negf %146 : vector<1x192xf32>
    %148 = math.exp %147 : vector<1x192xf32>
    %cst_27 = arith.constant 1.000000e+00 : f32
    %149 = vector.broadcast %cst_27 : f32 to vector<1x192xf32>
    %150 = arith.addf %149, %148 : vector<1x192xf32>
    %151 = arith.divf %149, %150 : vector<1x192xf32>
    %152 = vector.extract_strided_slice %151 {offsets = [0, 0], sizes = [1, 64], strides = [1, 1]} : vector<1x192xf32> to vector<1x64xf32>
    %153 = vector.extract_strided_slice %151 {offsets = [0, 64], sizes = [1, 64], strides = [1, 1]} : vector<1x192xf32> to vector<1x64xf32>
    %154 = vector.extract_strided_slice %151 {offsets = [0, 128], sizes = [1, 64], strides = [1, 1]} : vector<1x192xf32> to vector<1x64xf32>
    %155 = vector.extract_strided_slice %145 {offsets = [0, 192], sizes = [1, 64], strides = [1, 1]} : vector<1x256xf32> to vector<1x64xf32>
    %156 = math.tanh %155 : vector<1x64xf32>
    %157 = arith.mulf %153, %121 : vector<1x64xf32>
    %158 = arith.mulf %152, %156 : vector<1x64xf32>
    %159 = arith.addf %157, %158 : vector<1x64xf32>
    %160 = math.tanh %159 : vector<1x64xf32>
    %161 = arith.mulf %154, %160 : vector<1x64xf32>
    %162 = vector.extract_strided_slice %8 {offsets = [4, 0], sizes = [1, 256], strides = [1, 1]} : vector<8x256xf32> to vector<1x256xf32>
    %cst_28 = arith.constant dense<0.000000e+00> : vector<1x256xf32>
    %163 = tpu.matmul %142, %0, %cst_28 {dimension_numbers = #tpu.dot_dimension_numbers<[1], [0], [0], [1], [0, 0, 1, 1], [], []>} : vector<1x64xf32>, vector<64x256xf32>, vector<1x256xf32> -> vector<1x256xf32>
    %164 = arith.addf %162, %163 : vector<1x256xf32>
    %165 = vector.extract_strided_slice %164 {offsets = [0, 0], sizes = [1, 192], strides = [1, 1]} : vector<1x256xf32> to vector<1x192xf32>
    %166 = arith.negf %165 : vector<1x192xf32>
    %167 = math.exp %166 : vector<1x192xf32>
    %cst_29 = arith.constant 1.000000e+00 : f32
    %168 = vector.broadcast %cst_29 : f32 to vector<1x192xf32>
    %169 = arith.addf %168, %167 : vector<1x192xf32>
    %170 = arith.divf %168, %169 : vector<1x192xf32>
    %171 = vector.extract_strided_slice %170 {offsets = [0, 0], sizes = [1, 64], strides = [1, 1]} : vector<1x192xf32> to vector<1x64xf32>
    %172 = vector.extract_strided_slice %170 {offsets = [0, 64], sizes = [1, 64], strides = [1, 1]} : vector<1x192xf32> to vector<1x64xf32>
    %173 = vector.extract_strided_slice %170 {offsets = [0, 128], sizes = [1, 64], strides = [1, 1]} : vector<1x192xf32> to vector<1x64xf32>
    %174 = vector.extract_strided_slice %164 {offsets = [0, 192], sizes = [1, 64], strides = [1, 1]} : vector<1x256xf32> to vector<1x64xf32>
    %175 = math.tanh %174 : vector<1x64xf32>
    %176 = arith.mulf %172, %140 : vector<1x64xf32>
    %177 = arith.mulf %171, %175 : vector<1x64xf32>
    %178 = arith.addf %176, %177 : vector<1x64xf32>
    %179 = math.tanh %178 : vector<1x64xf32>
    %180 = arith.mulf %173, %179 : vector<1x64xf32>
    %181 = tpu.concatenate %180, %161 in 1 : vector<1x64xf32>, vector<1x64xf32> -> vector<1x128xf32>
    %cst_30 = arith.constant dense<0.000000e+00> : vector<1x256xf32>
    %182 = tpu.matmul %181, %1, %cst_30 {dimension_numbers = #tpu.dot_dimension_numbers<[1], [0], [0], [1], [0, 0, 1, 1], [], []>} : vector<1x128xf32>, vector<128x256xf32>, vector<1x256xf32> -> vector<1x256xf32>
    %183 = arith.addf %182, %2 : vector<1x256xf32>
    %184 = vector.extract_strided_slice %183 {offsets = [0, 0], sizes = [1, 192], strides = [1, 1]} : vector<1x256xf32> to vector<1x192xf32>
    %185 = arith.negf %184 : vector<1x192xf32>
    %186 = math.exp %185 : vector<1x192xf32>
    %cst_31 = arith.constant 1.000000e+00 : f32
    %187 = vector.broadcast %cst_31 : f32 to vector<1x192xf32>
    %188 = arith.addf %187, %186 : vector<1x192xf32>
    %189 = arith.divf %187, %188 : vector<1x192xf32>
    %190 = vector.extract_strided_slice %189 {offsets = [0, 0], sizes = [1, 64], strides = [1, 1]} : vector<1x192xf32> to vector<1x64xf32>
    %191 = vector.extract_strided_slice %189 {offsets = [0, 64], sizes = [1, 64], strides = [1, 1]} : vector<1x192xf32> to vector<1x64xf32>
    %192 = vector.extract_strided_slice %189 {offsets = [0, 128], sizes = [1, 64], strides = [1, 1]} : vector<1x192xf32> to vector<1x64xf32>
    %193 = vector.extract_strided_slice %183 {offsets = [0, 192], sizes = [1, 64], strides = [1, 1]} : vector<1x256xf32> to vector<1x64xf32>
    %194 = math.tanh %193 : vector<1x64xf32>
    %195 = arith.mulf %191, %159 : vector<1x64xf32>
    %196 = arith.mulf %190, %194 : vector<1x64xf32>
    %197 = arith.addf %195, %196 : vector<1x64xf32>
    %198 = math.tanh %197 : vector<1x64xf32>
    %199 = arith.mulf %192, %198 : vector<1x64xf32>
    %200 = vector.extract_strided_slice %8 {offsets = [5, 0], sizes = [1, 256], strides = [1, 1]} : vector<8x256xf32> to vector<1x256xf32>
    %cst_32 = arith.constant dense<0.000000e+00> : vector<1x256xf32>
    %201 = tpu.matmul %180, %0, %cst_32 {dimension_numbers = #tpu.dot_dimension_numbers<[1], [0], [0], [1], [0, 0, 1, 1], [], []>} : vector<1x64xf32>, vector<64x256xf32>, vector<1x256xf32> -> vector<1x256xf32>
    %202 = arith.addf %200, %201 : vector<1x256xf32>
    %203 = vector.extract_strided_slice %202 {offsets = [0, 0], sizes = [1, 192], strides = [1, 1]} : vector<1x256xf32> to vector<1x192xf32>
    %204 = arith.negf %203 : vector<1x192xf32>
    %205 = math.exp %204 : vector<1x192xf32>
    %cst_33 = arith.constant 1.000000e+00 : f32
    %206 = vector.broadcast %cst_33 : f32 to vector<1x192xf32>
    %207 = arith.addf %206, %205 : vector<1x192xf32>
    %208 = arith.divf %206, %207 : vector<1x192xf32>
    %209 = vector.extract_strided_slice %208 {offsets = [0, 0], sizes = [1, 64], strides = [1, 1]} : vector<1x192xf32> to vector<1x64xf32>
    %210 = vector.extract_strided_slice %208 {offsets = [0, 64], sizes = [1, 64], strides = [1, 1]} : vector<1x192xf32> to vector<1x64xf32>
    %211 = vector.extract_strided_slice %208 {offsets = [0, 128], sizes = [1, 64], strides = [1, 1]} : vector<1x192xf32> to vector<1x64xf32>
    %212 = vector.extract_strided_slice %202 {offsets = [0, 192], sizes = [1, 64], strides = [1, 1]} : vector<1x256xf32> to vector<1x64xf32>
    %213 = math.tanh %212 : vector<1x64xf32>
    %214 = arith.mulf %210, %178 : vector<1x64xf32>
    %215 = arith.mulf %209, %213 : vector<1x64xf32>
    %216 = arith.addf %214, %215 : vector<1x64xf32>
    %217 = math.tanh %216 : vector<1x64xf32>
    %218 = arith.mulf %211, %217 : vector<1x64xf32>
    %219 = tpu.concatenate %218, %199 in 1 : vector<1x64xf32>, vector<1x64xf32> -> vector<1x128xf32>
    %cst_34 = arith.constant dense<0.000000e+00> : vector<1x256xf32>
    %220 = tpu.matmul %219, %1, %cst_34 {dimension_numbers = #tpu.dot_dimension_numbers<[1], [0], [0], [1], [0, 0, 1, 1], [], []>} : vector<1x128xf32>, vector<128x256xf32>, vector<1x256xf32> -> vector<1x256xf32>
    %221 = arith.addf %220, %2 : vector<1x256xf32>
    %222 = vector.extract_strided_slice %221 {offsets = [0, 0], sizes = [1, 192], strides = [1, 1]} : vector<1x256xf32> to vector<1x192xf32>
    %223 = arith.negf %222 : vector<1x192xf32>
    %224 = math.exp %223 : vector<1x192xf32>
    %cst_35 = arith.constant 1.000000e+00 : f32
    %225 = vector.broadcast %cst_35 : f32 to vector<1x192xf32>
    %226 = arith.addf %225, %224 : vector<1x192xf32>
    %227 = arith.divf %225, %226 : vector<1x192xf32>
    %228 = vector.extract_strided_slice %227 {offsets = [0, 0], sizes = [1, 64], strides = [1, 1]} : vector<1x192xf32> to vector<1x64xf32>
    %229 = vector.extract_strided_slice %227 {offsets = [0, 64], sizes = [1, 64], strides = [1, 1]} : vector<1x192xf32> to vector<1x64xf32>
    %230 = vector.extract_strided_slice %227 {offsets = [0, 128], sizes = [1, 64], strides = [1, 1]} : vector<1x192xf32> to vector<1x64xf32>
    %231 = vector.extract_strided_slice %221 {offsets = [0, 192], sizes = [1, 64], strides = [1, 1]} : vector<1x256xf32> to vector<1x64xf32>
    %232 = math.tanh %231 : vector<1x64xf32>
    %233 = arith.mulf %229, %197 : vector<1x64xf32>
    %234 = arith.mulf %228, %232 : vector<1x64xf32>
    %235 = arith.addf %233, %234 : vector<1x64xf32>
    %236 = math.tanh %235 : vector<1x64xf32>
    %237 = arith.mulf %230, %236 : vector<1x64xf32>
    %238 = vector.extract_strided_slice %8 {offsets = [6, 0], sizes = [1, 256], strides = [1, 1]} : vector<8x256xf32> to vector<1x256xf32>
    %cst_36 = arith.constant dense<0.000000e+00> : vector<1x256xf32>
    %239 = tpu.matmul %218, %0, %cst_36 {dimension_numbers = #tpu.dot_dimension_numbers<[1], [0], [0], [1], [0, 0, 1, 1], [], []>} : vector<1x64xf32>, vector<64x256xf32>, vector<1x256xf32> -> vector<1x256xf32>
    %240 = arith.addf %238, %239 : vector<1x256xf32>
    %241 = vector.extract_strided_slice %240 {offsets = [0, 0], sizes = [1, 192], strides = [1, 1]} : vector<1x256xf32> to vector<1x192xf32>
    %242 = arith.negf %241 : vector<1x192xf32>
    %243 = math.exp %242 : vector<1x192xf32>
    %cst_37 = arith.constant 1.000000e+00 : f32
    %244 = vector.broadcast %cst_37 : f32 to vector<1x192xf32>
    %245 = arith.addf %244, %243 : vector<1x192xf32>
    %246 = arith.divf %244, %245 : vector<1x192xf32>
    %247 = vector.extract_strided_slice %246 {offsets = [0, 0], sizes = [1, 64], strides = [1, 1]} : vector<1x192xf32> to vector<1x64xf32>
    %248 = vector.extract_strided_slice %246 {offsets = [0, 64], sizes = [1, 64], strides = [1, 1]} : vector<1x192xf32> to vector<1x64xf32>
    %249 = vector.extract_strided_slice %246 {offsets = [0, 128], sizes = [1, 64], strides = [1, 1]} : vector<1x192xf32> to vector<1x64xf32>
    %250 = vector.extract_strided_slice %240 {offsets = [0, 192], sizes = [1, 64], strides = [1, 1]} : vector<1x256xf32> to vector<1x64xf32>
    %251 = math.tanh %250 : vector<1x64xf32>
    %252 = arith.mulf %248, %216 : vector<1x64xf32>
    %253 = arith.mulf %247, %251 : vector<1x64xf32>
    %254 = arith.addf %252, %253 : vector<1x64xf32>
    %255 = math.tanh %254 : vector<1x64xf32>
    %256 = arith.mulf %249, %255 : vector<1x64xf32>
    %257 = tpu.concatenate %256, %237 in 1 : vector<1x64xf32>, vector<1x64xf32> -> vector<1x128xf32>
    %cst_38 = arith.constant dense<0.000000e+00> : vector<1x256xf32>
    %258 = tpu.matmul %257, %1, %cst_38 {dimension_numbers = #tpu.dot_dimension_numbers<[1], [0], [0], [1], [0, 0, 1, 1], [], []>} : vector<1x128xf32>, vector<128x256xf32>, vector<1x256xf32> -> vector<1x256xf32>
    %259 = arith.addf %258, %2 : vector<1x256xf32>
    %260 = vector.extract_strided_slice %259 {offsets = [0, 0], sizes = [1, 192], strides = [1, 1]} : vector<1x256xf32> to vector<1x192xf32>
    %261 = arith.negf %260 : vector<1x192xf32>
    %262 = math.exp %261 : vector<1x192xf32>
    %cst_39 = arith.constant 1.000000e+00 : f32
    %263 = vector.broadcast %cst_39 : f32 to vector<1x192xf32>
    %264 = arith.addf %263, %262 : vector<1x192xf32>
    %265 = arith.divf %263, %264 : vector<1x192xf32>
    %266 = vector.extract_strided_slice %265 {offsets = [0, 0], sizes = [1, 64], strides = [1, 1]} : vector<1x192xf32> to vector<1x64xf32>
    %267 = vector.extract_strided_slice %265 {offsets = [0, 64], sizes = [1, 64], strides = [1, 1]} : vector<1x192xf32> to vector<1x64xf32>
    %268 = vector.extract_strided_slice %265 {offsets = [0, 128], sizes = [1, 64], strides = [1, 1]} : vector<1x192xf32> to vector<1x64xf32>
    %269 = vector.extract_strided_slice %259 {offsets = [0, 192], sizes = [1, 64], strides = [1, 1]} : vector<1x256xf32> to vector<1x64xf32>
    %270 = math.tanh %269 : vector<1x64xf32>
    %271 = arith.mulf %267, %235 : vector<1x64xf32>
    %272 = arith.mulf %266, %270 : vector<1x64xf32>
    %273 = arith.addf %271, %272 : vector<1x64xf32>
    %274 = math.tanh %273 : vector<1x64xf32>
    %275 = arith.mulf %268, %274 : vector<1x64xf32>
    %276 = vector.extract_strided_slice %8 {offsets = [7, 0], sizes = [1, 256], strides = [1, 1]} : vector<8x256xf32> to vector<1x256xf32>
    %cst_40 = arith.constant dense<0.000000e+00> : vector<1x256xf32>
    %277 = tpu.matmul %256, %0, %cst_40 {dimension_numbers = #tpu.dot_dimension_numbers<[1], [0], [0], [1], [0, 0, 1, 1], [], []>} : vector<1x64xf32>, vector<64x256xf32>, vector<1x256xf32> -> vector<1x256xf32>
    %278 = arith.addf %276, %277 : vector<1x256xf32>
    %279 = vector.extract_strided_slice %278 {offsets = [0, 0], sizes = [1, 192], strides = [1, 1]} : vector<1x256xf32> to vector<1x192xf32>
    %280 = arith.negf %279 : vector<1x192xf32>
    %281 = math.exp %280 : vector<1x192xf32>
    %cst_41 = arith.constant 1.000000e+00 : f32
    %282 = vector.broadcast %cst_41 : f32 to vector<1x192xf32>
    %283 = arith.addf %282, %281 : vector<1x192xf32>
    %284 = arith.divf %282, %283 : vector<1x192xf32>
    %285 = vector.extract_strided_slice %284 {offsets = [0, 0], sizes = [1, 64], strides = [1, 1]} : vector<1x192xf32> to vector<1x64xf32>
    %286 = vector.extract_strided_slice %284 {offsets = [0, 64], sizes = [1, 64], strides = [1, 1]} : vector<1x192xf32> to vector<1x64xf32>
    %287 = vector.extract_strided_slice %284 {offsets = [0, 128], sizes = [1, 64], strides = [1, 1]} : vector<1x192xf32> to vector<1x64xf32>
    %288 = vector.extract_strided_slice %278 {offsets = [0, 192], sizes = [1, 64], strides = [1, 1]} : vector<1x256xf32> to vector<1x64xf32>
    %289 = math.tanh %288 : vector<1x64xf32>
    %290 = arith.mulf %286, %254 : vector<1x64xf32>
    %291 = arith.mulf %285, %289 : vector<1x64xf32>
    %292 = arith.addf %290, %291 : vector<1x64xf32>
    %293 = math.tanh %292 : vector<1x64xf32>
    %294 = arith.mulf %287, %293 : vector<1x64xf32>
    %295 = tpu.concatenate %294, %275 in 1 : vector<1x64xf32>, vector<1x64xf32> -> vector<1x128xf32>
    %cst_42 = arith.constant dense<0.000000e+00> : vector<1x256xf32>
    %296 = tpu.matmul %295, %1, %cst_42 {dimension_numbers = #tpu.dot_dimension_numbers<[1], [0], [0], [1], [0, 0, 1, 1], [], []>} : vector<1x128xf32>, vector<128x256xf32>, vector<1x256xf32> -> vector<1x256xf32>
    %297 = arith.addf %296, %2 : vector<1x256xf32>
    %298 = vector.extract_strided_slice %297 {offsets = [0, 0], sizes = [1, 192], strides = [1, 1]} : vector<1x256xf32> to vector<1x192xf32>
    %299 = arith.negf %298 : vector<1x192xf32>
    %300 = math.exp %299 : vector<1x192xf32>
    %cst_43 = arith.constant 1.000000e+00 : f32
    %301 = vector.broadcast %cst_43 : f32 to vector<1x192xf32>
    %302 = arith.addf %301, %300 : vector<1x192xf32>
    %303 = arith.divf %301, %302 : vector<1x192xf32>
    %304 = vector.extract_strided_slice %303 {offsets = [0, 0], sizes = [1, 64], strides = [1, 1]} : vector<1x192xf32> to vector<1x64xf32>
    %305 = vector.extract_strided_slice %303 {offsets = [0, 64], sizes = [1, 64], strides = [1, 1]} : vector<1x192xf32> to vector<1x64xf32>
    %306 = vector.extract_strided_slice %303 {offsets = [0, 128], sizes = [1, 64], strides = [1, 1]} : vector<1x192xf32> to vector<1x64xf32>
    %307 = vector.extract_strided_slice %297 {offsets = [0, 192], sizes = [1, 64], strides = [1, 1]} : vector<1x256xf32> to vector<1x64xf32>
    %308 = math.tanh %307 : vector<1x64xf32>
    %309 = arith.mulf %305, %273 : vector<1x64xf32>
    %310 = arith.mulf %304, %308 : vector<1x64xf32>
    %311 = arith.addf %309, %310 : vector<1x64xf32>
    %312 = math.tanh %311 : vector<1x64xf32>
    %313 = arith.mulf %306, %312 : vector<1x64xf32>
    %c0_44 = arith.constant 0 : index
    %c0_45 = arith.constant 0 : index
    %314 = vector.load %arg6[%c0_44, %c0_45] : memref<64x1xf32, #tpu.memory_space<vmem>>, vector<64x1xf32>
    %cst_46 = arith.constant dense<0.000000e+00> : vector<1x1xf32>
    %315 = tpu.matmul %313, %314, %cst_46 {dimension_numbers = #tpu.dot_dimension_numbers<[1], [0], [0], [1], [0, 0, 1, 1], [], []>} : vector<1x64xf32>, vector<64x1xf32>, vector<1x1xf32> -> vector<1x1xf32>
    %c0_47 = arith.constant 0 : index
    %c0_48 = arith.constant 0 : index
    %316 = vector.load %arg7[%c0_47, %c0_48] : memref<1x1xf32, #tpu.memory_space<vmem>>, vector<1x1xf32>
    %317 = arith.addf %315, %316 : vector<1x1xf32>
    %c0_49 = arith.constant 0 : index
    %c0_50 = arith.constant 0 : index
    %318 = vector.load %arg8[%c0_49, %c0_50] : memref<1x1xf32, #tpu.memory_space<vmem>>, vector<1x1xf32>
    tpu.vector_store %arg8[%c0_49, %c0_50], %317 {strides = array<i32>} : memref<1x1xf32, #tpu.memory_space<vmem>>, vector<1x1xf32>,
    return
  }
}

</mosaic_0001>

<llo_original>
// kernel: tpu_custom_call.1
$region0: #{tpu_custom_call.1}
  #allocation0 [shape = 'u32[]', space=smem, size = 0x4, offset = 0x4, fixed_abs, tag = 'smem constant byte address 0x4 - core index']
  #allocation1 [shape = 'u32[144,128]{1,0:T(1,128)}', space=vmem, size = 0x12000, scoped, tag = 'internal scratch']
  #allocation2 [shape = 'f32[1,1]{1,0:T(1,128)S(1)}', space=vmem, size = 0x200, scoped, tag = 'scoped memory for tpu_custom_call.1']
  %s0 = inlined_call_operand.vmem [shape: f32[8,1], index: 0, kind: input, shape index: {}]
  %s1 = inlined_call_operand.vmem [shape: f32[1,256], index: 1, kind: input, shape index: {}]
  %s2 = inlined_call_operand.hbm [shape: f32[64,256], index: 2, kind: input, shape index: {}]
  %s3 = inlined_call_operand.vmem [shape: f32[1,256], index: 3, kind: input, shape index: {}]
  %s4 = inlined_call_operand.hbm [shape: f32[128,256], index: 4, kind: input, shape index: {}]
  %s5 = inlined_call_operand.vmem [shape: f32[1,256], index: 5, kind: input, shape index: {}]
  %s6 = inlined_call_operand.vmem [shape: f32[64,1], index: 6, kind: input, shape index: {}]
  %s7 = inlined_call_operand.<no memory space> [shape: f32[1,1], index: 7, kind: input, shape index: {}]
  %s8 = inlined_call_operand.hbm [shape: f32[1,1], index: 8, kind: output, shape index: {}]
  %s9 = sld [smem:[#allocation0]]
  $region50: #{tpu_custom_call.1} parent=0
    _
  %s11 = ssub.s32 1, %s9
  %s12 = scalar_select 0, %s11, %s9
  %v13 = vstv %s7
  %14 = vst [vmem:[#allocation2] sm:$0x1] %v13
  $region1: #{tpu_custom_call.1} parent=0
    #allocation3 [shape = 'u8[65536]{0}', space=vmem, size = 0x10000, scoped, tag = 'input window, operand 2, single buffered']
    #allocation4 [shape = 's32[1]{0}', space=sflag, size = 0x4, scoped, tag = 'scoped memory for tpu_custom_call.1']
    #allocation5 [shape = 's32[1]{0}', space=sflag, size = 0x4, scoped, tag = 'scoped memory for tpu_custom_call.1']
    #allocation6 [shape = 'u8[131072]{0}', space=vmem, size = 0x20000, scoped, tag = 'input window, operand 4, single buffered']
    #allocation7 [shape = 's32[1]{0}', space=sflag, size = 0x4, scoped, tag = 'scoped memory for tpu_custom_call.1']
    #allocation8 [shape = 'u8[512]{0}', space=vmem, size = 0x400, scoped, tag = 'output window, operand 0, single buffered']
    %15 = vsyncpa [#allocation4], 0
    %16 = vsyncpa [#allocation7], 0
    %17 = vsyncpa [#allocation5], 0
    // Predicated region
    $region2: #{tpu_custom_call.1} parent=1 // pred_check
      _
    $region3: #{tpu_custom_call.1} parent=1 // pred_check_branch
      %19 = sbr.rel (0) target = $region5
    $region4: #{tpu_custom_call.1} parent=1 // pred_region
      _
    $region5: #{tpu_custom_call.1} parent=1 // pred_fallthru
      _
    // Predicated region
    $region6: #{tpu_custom_call.1} parent=1 // pred_check
      _
    $region7: #{tpu_custom_call.1} parent=1 // pred_check_branch
      %21 = sbr.rel (0) target = $region9
    $region8: #{tpu_custom_call.1} parent=1 // pred_region
      _
    $region9: #{tpu_custom_call.1} parent=1 // pred_fallthru
      _
    // Predicated region
    $region10: #{tpu_custom_call.1} parent=1 // pred_check
      _
    $region11: #{tpu_custom_call.1} parent=1 // pred_check_branch
      %23 = sbr.rel (0) target = $region13
    $region12: #{tpu_custom_call.1} parent=1 // pred_region
      %s25 = ssub.s32 2048, 2048
      %26 = vsyncadd [#allocation4], %s25
      %s27 = sshll.u32 [#allocation3], 4
      %s28 = int_to_ptr.vmem [resolvable:$true] %s27
      %33 = dma.hbm_to_vmem [thread:$0]  %s2, 2048, %s28, [#allocation4], 256, 256, 16
    $region13: #{tpu_custom_call.1} parent=1 // pred_fallthru
      _
    // Predicated region
    $region14: #{tpu_custom_call.1} parent=1 // pred_check
      _
    $region15: #{tpu_custom_call.1} parent=1 // pred_check_branch
      %35 = sbr.rel (0) target = $region17
    $region16: #{tpu_custom_call.1} parent=1 // pred_region
      _
    $region17: #{tpu_custom_call.1} parent=1 // pred_fallthru
      _
    // Predicated region
    $region18: #{tpu_custom_call.1} parent=1 // pred_check
      _
    $region19: #{tpu_custom_call.1} parent=1 // pred_check_branch
      %37 = sbr.rel (0) target = $region21
    $region20: #{tpu_custom_call.1} parent=1 // pred_region
      %s39 = ssub.s32 4096, 4096
      %40 = vsyncadd [#allocation7], %s39
      %s41 = sshll.u32 [#allocation6], 4
      %s42 = int_to_ptr.vmem [resolvable:$true] %s41
      %47 = dma.hbm_to_vmem [thread:$0]  %s4, 4096, %s42, [#allocation7], 256, 256, 16
    $region21: #{tpu_custom_call.1} parent=1 // pred_fallthru
      _
    // Predicated region
    $region22: #{tpu_custom_call.1} parent=1 // pred_check
      _
    $region23: #{tpu_custom_call.1} parent=1 // pred_check_branch
      %49 = sbr.rel (0) target = $region25
    $region24: #{tpu_custom_call.1} parent=1 // pred_region
      _
    $region25: #{tpu_custom_call.1} parent=1 // pred_fallthru
      _
    // Predicated region
    $region26: #{tpu_custom_call.1} parent=1 // pred_check
      _
    $region27: #{tpu_custom_call.1} parent=1 // pred_check_branch
      %51 = sbr.rel (0) target = $region29
    $region28: #{tpu_custom_call.1} parent=1 // pred_region
      _
    $region29: #{tpu_custom_call.1} parent=1 // pred_fallthru
      _
    // Predicated region
    $region30: #{tpu_custom_call.1} parent=1 // pred_check
      _
    $region31: #{tpu_custom_call.1} parent=1 // pred_check_branch
      %53 = sbr.rel (0) target = $region33
    $region32: #{tpu_custom_call.1} parent=1 // pred_region
      _
    $region33: #{tpu_custom_call.1} parent=1 // pred_fallthru
      _
    // Predicated region
    $region34: #{tpu_custom_call.1} parent=1 // pred_check
      _
    $region35: #{tpu_custom_call.1} parent=1 // pred_check_branch
      %55 = sbr.rel (0) target = $region37
    $region36: #{tpu_custom_call.1} parent=1 // pred_region
      %56 = dma.done [#allocation4], 2048
    $region37: #{tpu_custom_call.1} parent=1 // pred_fallthru
      _
    // Predicated region
    $region38: #{tpu_custom_call.1} parent=1 // pred_check
      _
    $region39: #{tpu_custom_call.1} parent=1 // pred_check_branch
      %58 = sbr.rel (0) target = $region41
    $region40: #{tpu_custom_call.1} parent=1 // pred_region
      %59 = dma.done [#allocation7], 4096
    $region41: #{tpu_custom_call.1} parent=1 // pred_fallthru
      _
    %v60 = vld [vmem:[#allocation3] sm:$0xff]
    %v61 = vld [vmem:[#allocation3 + $0x8] sm:$0xff]
    %v62 = vld [vmem:[#allocation3 + $0x10] sm:$0xff]
    %v63 = vld [vmem:[#allocation3 + $0x18] sm:$0xff]
    %v64 = vld [vmem:[#allocation3 + $0x20] sm:$0xff]
    %v65 = vld [vmem:[#allocation3 + $0x28] sm:$0xff]
    %v66 = vld [vmem:[#allocation3 + $0x30] sm:$0xff]
    %v67 = vld [vmem:[#allocation3 + $0x38] sm:$0xff]
    %v68 = vld [vmem:[#allocation3 + $0x40] sm:$0xff]
    %v69 = vld [vmem:[#allocation3 + $0x48] sm:$0xff]
    %v70 = vld [vmem:[#allocation3 + $0x50] sm:$0xff]
    %v71 = vld [vmem:[#allocation3 + $0x58] sm:$0xff]
    %v72 = vld [vmem:[#allocation3 + $0x60] sm:$0xff]
    %v73 = vld [vmem:[#allocation3 + $0x68] sm:$0xff]
    %v74 = vld [vmem:[#allocation3 + $0x70] sm:$0xff]
    %v75 = vld [vmem:[#allocation3 + $0x78] sm:$0xff]
    %v76 = vld [vmem:[#allocation6] sm:$0xff]
    %v77 = vld [vmem:[#allocation6 + $0x8] sm:$0xff]
    %v78 = vld [vmem:[#allocation6 + $0x10] sm:$0xff]
    %v79 = vld [vmem:[#allocation6 + $0x18] sm:$0xff]
    %v80 = vld [vmem:[#allocation6 + $0x20] sm:$0xff]
    %v81 = vld [vmem:[#allocation6 + $0x28] sm:$0xff]
    %v82 = vld [vmem:[#allocation6 + $0x30] sm:$0xff]
    %v83 = vld [vmem:[#allocation6 + $0x38] sm:$0xff]
    %v84 = vld [vmem:[#allocation6 + $0x40] sm:$0xff]
    %v85 = vld [vmem:[#allocation6 + $0x48] sm:$0xff]
    %v86 = vld [vmem:[#allocation6 + $0x50] sm:$0xff]
    %v87 = vld [vmem:[#allocation6 + $0x58] sm:$0xff]
    %v88 = vld [vmem:[#allocation6 + $0x60] sm:$0xff]
    %v89 = vld [vmem:[#allocation6 + $0x68] sm:$0xff]
    %v90 = vld [vmem:[#allocation6 + $0x70] sm:$0xff]
    %v91 = vld [vmem:[#allocation6 + $0x78] sm:$0xff]
    %v92 = vld [vmem:[#allocation6 + $0x80] sm:$0xff]
    %v93 = vld [vmem:[#allocation6 + $0x88] sm:$0xff]
    %v94 = vld [vmem:[#allocation6 + $0x90] sm:$0xff]
    %v95 = vld [vmem:[#allocation6 + $0x98] sm:$0xff]
    %v96 = vld [vmem:[#allocation6 + $0xa0] sm:$0xff]
    %v97 = vld [vmem:[#allocation6 + $0xa8] sm:$0xff]
    %v98 = vld [vmem:[#allocation6 + $0xb0] sm:$0xff]
    %v99 = vld [vmem:[#allocation6 + $0xb8] sm:$0xff]
    %v100 = vld [vmem:[#allocation6 + $0xc0] sm:$0xff]
    %v101 = vld [vmem:[#allocation6 + $0xc8] sm:$0xff]
    %v102 = vld [vmem:[#allocation6 + $0xd0] sm:$0xff]
    %v103 = vld [vmem:[#allocation6 + $0xd8] sm:$0xff]
    %v104 = vld [vmem:[#allocation6 + $0xe0] sm:$0xff]
    %v105 = vld [vmem:[#allocation6 + $0xe8] sm:$0xff]
    %v106 = vld [vmem:[#allocation6 + $0xf0] sm:$0xff]
    %v107 = vld [vmem:[#allocation6 + $0xf8] sm:$0xff]
    %v108 = vld [vmem:[%s5] sm:$0x3]
    %v109 = vld [vmem:[%s0] sm:$0xff]
    %v110 = vld [vmem:[%s1] sm:$0x3]
    %v111 = vld [vmem:[%s3] sm:$0x3]
    %v113 = vlaneseq
    %v114 = vshrl.u32 %v113, 7
    %v115 = vsub.s32 0, %v114
    %v116 = vrot.slane %v111, %v115
    %v117 = vlaneseq
    %v118 = vshrl.u32 %v117, 7
    %v119 = vsub.s32 1, %v118
    %v120 = vrot.slane %v111, %v119
    %v124 = vlaneseq
    %v125 = vshrl.u32 %v124, 7
    %v126 = vsub.s32 0, %v125
    %v127 = vrot.slane %v110, %v126
    %v128 = vlaneseq
    %v129 = vshrl.u32 %v128, 7
    %v130 = vsub.s32 1, %v129
    %v131 = vrot.slane %v110, %v130
    %vm132 = vcmask 7168
    %v134 = vsel %vm132, %v109, 0
    %vm136 = vcmask 1040384
    %v137 = vsel %vm136, %v127, 0
    %v139 = vsel %vm136, %v131, 0
    %141 = vmatprep.subr.mxu0 %v139
    %142 = vmatpush1.msra.mxu0 %v137
    %143 = vmatprep.subr.mxu0 0.0
    %144 = vmatpush1.msra.mxu0 0.0
    %145 = vmatprep.subr.mxu0 0.0
    %146 = vmatpush1.msra.mxu0 0.0
    %147 = vmatprep.subr.mxu0 0.0
    %148 = vmatpush1.msra.mxu0 0.0
    %149 = vmatprep.subr.mxu0 0.0
    %150 = vmatpush1.msra.mxu0 0.0
    %151 = vmatprep.subr.mxu0 0.0
    %152 = vmatpush1.msra.mxu0 0.0
    %153 = vmatprep.subr.mxu0 0.0
    %154 = vmatpush1.msra.mxu0 0.0
    %155 = vmatprep.subr.mxu0 0.0
    %156 = vmatpush1.msra.mxu0 0.0
    %157 = vmatprep.subr.mxu0 0.0
    %158 = vmatpush1.msra.mxu0 0.0
    %159 = vmatprep.subr.mxu0 0.0
    %160 = vmatpush1.msra.mxu0 0.0
    %161 = vmatprep.subr.mxu0 0.0
    %162 = vmatpush1.msra.mxu0 0.0
    %163 = vmatprep.subr.mxu0 0.0
    %164 = vmatpush1.msra.mxu0 0.0
    %165 = vmatprep.subr.mxu0 0.0
    %166 = vmatpush1.msra.mxu0 0.0
    %167 = vmatprep.subr.mxu0 0.0
    %168 = vmatpush1.msra.mxu0 0.0
    %169 = vmatprep.subr.mxu0 0.0
    %170 = vmatpush1.msra.mxu0 0.0
    %171 = vmatprep.subr.mxu0 0.0
    %172 = vmatpush1.msra.mxu0 0.0
    %173 = vmatprep.subr.mxu0 0.0
    %174 = vmatpush1.msra.mxu0 0.0
    %175 = vmatprep.subr.mxu0 0.0
    %176 = vmatpush1.msra.mxu0 0.0
    %177 = vmatprep.subr.mxu0 0.0
    %178 = vmatpush1.msra.mxu0 0.0
    %179 = vmatprep.subr.mxu0 0.0
    %180 = vmatpush1.msra.mxu0 0.0
    %181 = vmatprep.subr.mxu0 0.0
    %182 = vmatpush1.msra.mxu0 0.0
    %183 = vmatprep.subr.mxu0 0.0
    %184 = vmatpush1.msra.mxu0 0.0
    %185 = vmatprep.subr.mxu0 0.0
    %186 = vmatpush1.msra.mxu0 0.0
    %187 = vmatprep.subr.mxu0 0.0
    %188 = vmatpush1.msra.mxu0 0.0
    %189 = vmatprep.subr.mxu0 0.0
    %190 = vmatpush1.msra.mxu0 0.0
    %191 = vmatprep.subr.mxu0 0.0
    %192 = vmatpush1.msra.mxu0 0.0
    %193 = vmatprep.subr.mxu0 0.0
    %194 = vmatpush1.msra.mxu0 0.0
    %195 = vmatprep.subr.mxu0 0.0
    %196 = vmatpush1.msra.mxu0 0.0
    %197 = vmatprep.subr.mxu0 0.0
    %198 = vmatpush1.msra.mxu0 0.0
    %199 = vmatprep.subr.mxu0 0.0
    %200 = vmatpush1.msra.mxu0 0.0
    %201 = vmatprep.subr.mxu0 0.0
    %202 = vmatpush1.msra.mxu0 0.0
    %203 = vmatprep.subr.mxu0 0.0
    %204 = vmatpush1.msra.mxu0 0.0
    %205 = vmatprep.mubr.f32.mxu0 0.0
    %206 = vmatmul.mubr.f32.gmra.mrb[0].mxu0 %v134
    %v207 = vpop.f32.mrb[0].mxu0
    %v208 = vadd.f32 %v116, %v207
    %v209 = vpop.f32.mrb[0].mxu0
    %v210 = vadd.f32 %v120, %v209
    %211 = vdwg.mxu0
    %vm212 = vcmask 523264
    %v214 = vsel %vm212, 0.0, 0
    %216 = vmatprep.subr.mxu0 %v61
    %217 = vmatpush1.msra.mxu0 %v60
    %218 = vmatprep.subr.mxu0 %v63
    %219 = vmatpush1.msra.mxu0 %v62
    %220 = vmatprep.subr.mxu0 %v65
    %221 = vmatpush1.msra.mxu0 %v64
    %222 = vmatprep.subr.mxu0 %v67
    %223 = vmatpush1.msra.mxu0 %v66
    %224 = vmatprep.subr.mxu0 %v69
    %225 = vmatpush1.msra.mxu0 %v68
    %226 = vmatprep.subr.mxu0 %v71
    %227 = vmatpush1.msra.mxu0 %v70
    %228 = vmatprep.subr.mxu0 %v73
    %229 = vmatpush1.msra.mxu0 %v72
    %230 = vmatprep.subr.mxu0 %v75
    %231 = vmatpush1.msra.mxu0 %v74
    %232 = vmatprep.subr.mxu0 0.0
    %233 = vmatpush1.msra.mxu0 0.0
    %234 = vmatprep.subr.mxu0 0.0
    %235 = vmatpush1.msra.mxu0 0.0
    %236 = vmatprep.subr.mxu0 0.0
    %237 = vmatpush1.msra.mxu0 0.0
    %238 = vmatprep.subr.mxu0 0.0
    %239 = vmatpush1.msra.mxu0 0.0
    %240 = vmatprep.subr.mxu0 0.0
    %241 = vmatpush1.msra.mxu0 0.0
    %242 = vmatprep.subr.mxu0 0.0
    %243 = vmatpush1.msra.mxu0 0.0
    %244 = vmatprep.subr.mxu0 0.0
    %245 = vmatpush1.msra.mxu0 0.0
    %246 = vmatprep.subr.mxu0 0.0
    %247 = vmatpush1.msra.mxu0 0.0
    %248 = vmatprep.subr.mxu0 0.0
    %249 = vmatpush1.msra.mxu0 0.0
    %250 = vmatprep.subr.mxu0 0.0
    %251 = vmatpush1.msra.mxu0 0.0
    %252 = vmatprep.subr.mxu0 0.0
    %253 = vmatpush1.msra.mxu0 0.0
    %254 = vmatprep.subr.mxu0 0.0
    %255 = vmatpush1.msra.mxu0 0.0
    %256 = vmatprep.subr.mxu0 0.0
    %257 = vmatpush1.msra.mxu0 0.0
    %258 = vmatprep.subr.mxu0 0.0
    %259 = vmatpush1.msra.mxu0 0.0
    %260 = vmatprep.subr.mxu0 0.0
    %261 = vmatpush1.msra.mxu0 0.0
    %262 = vmatprep.subr.mxu0 0.0
    %263 = vmatpush1.msra.mxu0 0.0
    %264 = vmatprep.subr.mxu0 0.0
    %265 = vmatpush1.msra.mxu0 0.0
    %266 = vmatprep.subr.mxu0 0.0
    %267 = vmatpush1.msra.mxu0 0.0
    %268 = vmatprep.subr.mxu0 0.0
    %269 = vmatpush1.msra.mxu0 0.0
    %270 = vmatprep.subr.mxu0 0.0
    %271 = vmatpush1.msra.mxu0 0.0
    %272 = vmatprep.subr.mxu0 0.0
    %273 = vmatpush1.msra.mxu0 0.0
    %274 = vmatprep.subr.mxu0 0.0
    %275 = vmatpush1.msra.mxu0 0.0
    %276 = vmatprep.subr.mxu0 0.0
    %277 = vmatpush1.msra.mxu0 0.0
    %278 = vmatprep.subr.mxu0 0.0
    %279 = vmatpush1.msra.mxu0 0.0
    %280 = vmatprep.mubr.f32.mxu0 0.0
    %281 = vmatmul.mubr.f32.gmra.mrb[0].mxu0 %v214
    %v282 = vpop.f32.mrb[0].mxu0
    %v283 = vadd.f32 0.0, %v282
    %v284 = vpop.f32.mrb[0].mxu0
    %v285 = vadd.f32 0.0, %v284
    %286 = vdwg.mxu0
    %v287 = vadd.f32 %v208, %v283
    %v288 = vadd.f32 %v210, %v285
    %v289 = vxor.u32 %v287, 2147483648
    %v290 = vxor.u32 %v288, 2147483648
    %v291 = vmul.f32 %v289, 1.442695
    %v292 = vpow.pop %v291
    %v293 = vmul.f32 %v290, 1.442695
    %v294 = vpow.pop %v293
    %v295 = vadd.f32 %v292, 1.0
    %v296 = vadd.f32 %v294, 1.0
    %v297 = vrcp.pop %v295
    %v298 = vmul.f32 1.0, %v297
    %v299 = vrcp.pop %v296
    %v300 = vmul.f32 1.0, %v299
    %v301 = vtanh.pop %v288
    %v302 = vmul.f32 %v298, 0.0
    %304 = vrot.lane.b32.xlu0 %v301, 64
    %v305 = vpop.permute.xlu0 %304
    %v307 = vmul.f32 %v298, %v305
    %309 = vrot.lane.b32.xlu0 %v307, 64
    %v310 = vpop.permute.xlu0 %309
    %v312 = vadd.f32 %v302, %v310
    %v313 = vtanh.pop %v312
    %315 = vrot.lane.b32.xlu0 %v313, 64
    %v316 = vpop.permute.xlu0 %315
    %v318 = vmul.f32 %v300, %v316
    %v319 = vsel %vm212, %v318, 0.0
    %v321 = vlaneseq
    %v322 = vshrl.u32 %v321, 7
    %v323 = vsub.s32 0, %v322
    %v324 = vrot.slane %v108, %v323
    %v325 = vlaneseq
    %v326 = vshrl.u32 %v325, 7
    %v327 = vsub.s32 1, %v326
    %v328 = vrot.slane %v108, %v327
    %331 = vmatprep.subr.mxu0 %v77
    %332 = vmatpush1.msra.mxu0 %v76
    %333 = vmatprep.subr.mxu0 %v79
    %334 = vmatpush1.msra.mxu0 %v78
    %335 = vmatprep.subr.mxu0 %v81
    %336 = vmatpush1.msra.mxu0 %v80
    %337 = vmatprep.subr.mxu0 %v83
    %338 = vmatpush1.msra.mxu0 %v82
    %339 = vmatprep.subr.mxu0 %v85
    %340 = vmatpush1.msra.mxu0 %v84
    %341 = vmatprep.subr.mxu0 %v87
    %342 = vmatpush1.msra.mxu0 %v86
    %343 = vmatprep.subr.mxu0 %v89
    %344 = vmatpush1.msra.mxu0 %v88
    %345 = vmatprep.subr.mxu0 %v91
    %346 = vmatpush1.msra.mxu0 %v90
    %347 = vmatprep.subr.mxu0 %v93
    %348 = vmatpush1.msra.mxu0 %v92
    %349 = vmatprep.subr.mxu0 %v95
    %350 = vmatpush1.msra.mxu0 %v94
    %351 = vmatprep.subr.mxu0 %v97
    %352 = vmatpush1.msra.mxu0 %v96
    %353 = vmatprep.subr.mxu0 %v99
    %354 = vmatpush1.msra.mxu0 %v98
    %355 = vmatprep.subr.mxu0 %v101
    %356 = vmatpush1.msra.mxu0 %v100
    %357 = vmatprep.subr.mxu0 %v103
    %358 = vmatpush1.msra.mxu0 %v102
    %359 = vmatprep.subr.mxu0 %v105
    %360 = vmatpush1.msra.mxu0 %v104
    %361 = vmatprep.subr.mxu0 %v107
    %362 = vmatpush1.msra.mxu0 %v106
    %363 = vmatprep.subr.mxu0 0.0
    %364 = vmatpush1.msra.mxu0 0.0
    %365 = vmatprep.subr.mxu0 0.0
    %366 = vmatpush1.msra.mxu0 0.0
    %367 = vmatprep.subr.mxu0 0.0
    %368 = vmatpush1.msra.mxu0 0.0
    %369 = vmatprep.subr.mxu0 0.0
    %370 = vmatpush1.msra.mxu0 0.0
    %371 = vmatprep.subr.mxu0 0.0
    %372 = vmatpush1.msra.mxu0 0.0
    %373 = vmatprep.subr.mxu0 0.0
    %374 = vmatpush1.msra.mxu0 0.0
    %375 = vmatprep.subr.mxu0 0.0
    %376 = vmatpush1.msra.mxu0 0.0
    %377 = vmatprep.subr.mxu0 0.0
    %378 = vmatpush1.msra.mxu0 0.0
    %379 = vmatprep.subr.mxu0 0.0
    %380 = vmatpush1.msra.mxu0 0.0
    %381 = vmatprep.subr.mxu0 0.0
    %382 = vmatpush1.msra.mxu0 0.0
    %383 = vmatprep.subr.mxu0 0.0
    %384 = vmatpush1.msra.mxu0 0.0
    %385 = vmatprep.subr.mxu0 0.0
    %386 = vmatpush1.msra.mxu0 0.0
    %387 = vmatprep.subr.mxu0 0.0
    %388 = vmatpush1.msra.mxu0 0.0
    %389 = vmatprep.subr.mxu0 0.0
    %390 = vmatpush1.msra.mxu0 0.0
    %391 = vmatprep.subr.mxu0 0.0
    %392 = vmatpush1.msra.mxu0 0.0
    %393 = vmatprep.subr.mxu0 0.0
    %394 = vmatpush1.msra.mxu0 0.0
    %395 = vmatprep.mubr.f32.mxu0 0.0
    %396 = vmatmul.mubr.f32.gmra.mrb[0].mxu0 %v319
    %v397 = vpop.f32.mrb[0].mxu0
    %v398 = vadd.f32 %v324, %v397
    %v399 = vpop.f32.mrb[0].mxu0
    %v400 = vadd.f32 %v328, %v399
    %401 = vdwg.mxu0
    %v402 = vxor.u32 %v398, 2147483648
    %v403 = vxor.u32 %v400, 2147483648
    %v404 = vmul.f32 %v402, 1.442695
    %v405 = vpow.pop %v404
    %v406 = vmul.f32 %v403, 1.442695
    %v407 = vpow.pop %v406
    %v408 = vadd.f32 %v405, 1.0
    %v409 = vadd.f32 %v407, 1.0
    %v410 = vrcp.pop %v408
    %v411 = vmul.f32 1.0, %v410
    %v412 = vrcp.pop %v409
    %v413 = vmul.f32 1.0, %v412
    %v414 = vtanh.pop %v400
    %v415 = vmul.f32 %v411, 0.0
    %417 = vrot.lane.b32.xlu0 %v414, 64
    %v418 = vpop.permute.xlu0 %417
    %v420 = vmul.f32 %v411, %v418
    %422 = vrot.lane.b32.xlu0 %v420, 64
    %v423 = vpop.permute.xlu0 %422
    %v425 = vadd.f32 %v415, %v423
    %v426 = vtanh.pop %v425
    %428 = vrot.lane.b32.xlu0 %v426, 64
    %v429 = vpop.permute.xlu0 %428
    %v431 = vmul.f32 %v413, %v429
    %v433 = vsel %vm212, %v318, 0
    %435 = vmatprep.subr.mxu0 %v61
    %436 = vmatpush1.msra.mxu0 %v60
    %437 = vmatprep.subr.mxu0 %v63
    %438 = vmatpush1.msra.mxu0 %v62
    %439 = vmatprep.subr.mxu0 %v65
    %440 = vmatpush1.msra.mxu0 %v64
    %441 = vmatprep.subr.mxu0 %v67
    %442 = vmatpush1.msra.mxu0 %v66
    %443 = vmatprep.subr.mxu0 %v69
    %444 = vmatpush1.msra.mxu0 %v68
    %445 = vmatprep.subr.mxu0 %v71
    %446 = vmatpush1.msra.mxu0 %v70
    %447 = vmatprep.subr.mxu0 %v73
    %448 = vmatpush1.msra.mxu0 %v72
    %449 = vmatprep.subr.mxu0 %v75
    %450 = vmatpush1.msra.mxu0 %v74
    %451 = vmatprep.subr.mxu0 0.0
    %452 = vmatpush1.msra.mxu0 0.0
    %453 = vmatprep.subr.mxu0 0.0
    %454 = vmatpush1.msra.mxu0 0.0
    %455 = vmatprep.subr.mxu0 0.0
    %456 = vmatpush1.msra.mxu0 0.0
    %457 = vmatprep.subr.mxu0 0.0
    %458 = vmatpush1.msra.mxu0 0.0
    %459 = vmatprep.subr.mxu0 0.0
    %460 = vmatpush1.msra.mxu0 0.0
    %461 = vmatprep.subr.mxu0 0.0
    %462 = vmatpush1.msra.mxu0 0.0
    %463 = vmatprep.subr.mxu0 0.0
    %464 = vmatpush1.msra.mxu0 0.0
    %465 = vmatprep.subr.mxu0 0.0
    %466 = vmatpush1.msra.mxu0 0.0
    %467 = vmatprep.subr.mxu0 0.0
    %468 = vmatpush1.msra.mxu0 0.0
    %469 = vmatprep.subr.mxu0 0.0
    %470 = vmatpush1.msra.mxu0 0.0
    %471 = vmatprep.subr.mxu0 0.0
    %472 = vmatpush1.msra.mxu0 0.0
    %473 = vmatprep.subr.mxu0 0.0
    %474 = vmatpush1.msra.mxu0 0.0
    %475 = vmatprep.subr.mxu0 0.0
    %476 = vmatpush1.msra.mxu0 0.0
    %477 = vmatprep.subr.mxu0 0.0
    %478 = vmatpush1.msra.mxu0 0.0
    %479 = vmatprep.subr.mxu0 0.0
    %480 = vmatpush1.msra.mxu0 0.0
    %481 = vmatprep.subr.mxu0 0.0
    %482 = vmatpush1.msra.mxu0 0.0
    %483 = vmatprep.subr.mxu0 0.0
    %484 = vmatpush1.msra.mxu0 0.0
    %485 = vmatprep.subr.mxu0 0.0
    %486 = vmatpush1.msra.mxu0 0.0
    %487 = vmatprep.subr.mxu0 0.0
    %488 = vmatpush1.msra.mxu0 0.0
    %489 = vmatprep.subr.mxu0 0.0
    %490 = vmatpush1.msra.mxu0 0.0
    %491 = vmatprep.subr.mxu0 0.0
    %492 = vmatpush1.msra.mxu0 0.0
    %493 = vmatprep.subr.mxu0 0.0
    %494 = vmatpush1.msra.mxu0 0.0
    %495 = vmatprep.subr.mxu0 0.0
    %496 = vmatpush1.msra.mxu0 0.0
    %497 = vmatprep.subr.mxu0 0.0
    %498 = vmatpush1.msra.mxu0 0.0
    %499 = vmatprep.mubr.f32.mxu0 0.0
    %500 = vmatmul.mubr.f32.gmra.mrb[0].mxu0 %v433
    %v501 = vpop.f32.mrb[0].mxu0
    %v502 = vadd.f32 0.0, %v501
    %v503 = vpop.f32.mrb[0].mxu0
    %v504 = vadd.f32 0.0, %v503
    %505 = vdwg.mxu0
    %v508 = vrot.slane %v502, 7
    %v509 = vrot.slane %v504, 7
    %v512 = vadd.f32 %v208, %v508
    %v513 = vadd.f32 %v210, %v509
    %v514 = vxor.u32 %v512, 2147483648
    %v515 = vxor.u32 %v513, 2147483648
    %v516 = vmul.f32 %v514, 1.442695
    %v517 = vpow.pop %v516
    %v518 = vmul.f32 %v515, 1.442695
    %v519 = vpow.pop %v518
    %v520 = vadd.f32 %v517, 1.0
    %v521 = vadd.f32 %v519, 1.0
    %v522 = vrcp.pop %v520
    %v523 = vmul.f32 1.0, %v522
    %v524 = vrcp.pop %v521
    %v525 = vmul.f32 1.0, %v524
    %v526 = vtanh.pop %v513
    %v528 = vrot.slane %v312, 7
    %v530 = vmul.f32 %v523, %v528
    %532 = vrot.lane.b32.xlu0 %v526, 64
    %v533 = vpop.permute.xlu0 %532
    %v535 = vmul.f32 %v523, %v533
    %537 = vrot.lane.b32.xlu0 %v535, 64
    %v538 = vpop.permute.xlu0 %537
    %v540 = vadd.f32 %v530, %v538
    %v541 = vtanh.pop %v540
    %543 = vrot.lane.b32.xlu0 %v541, 64
    %v544 = vpop.permute.xlu0 %543
    %v546 = vmul.f32 %v525, %v544
    %v548 = vrot.slane %v431, 7
    %549 = vrot.lane.b32.xlu0 %v548, 64
    %v550 = vpop.permute.xlu0 %549
    %v552 = vsel %vm212, %v546, %v550
    %v554 = vrot.slane %v552, 1
    %556 = vmatprep.subr.mxu0 %v77
    %557 = vmatpush1.msra.mxu0 %v76
    %558 = vmatprep.subr.mxu0 %v79
    %559 = vmatpush1.msra.mxu0 %v78
    %560 = vmatprep.subr.mxu0 %v81
    %561 = vmatpush1.msra.mxu0 %v80
    %562 = vmatprep.subr.mxu0 %v83
    %563 = vmatpush1.msra.mxu0 %v82
    %564 = vmatprep.subr.mxu0 %v85
    %565 = vmatpush1.msra.mxu0 %v84
    %566 = vmatprep.subr.mxu0 %v87
    %567 = vmatpush1.msra.mxu0 %v86
    %568 = vmatprep.subr.mxu0 %v89
    %569 = vmatpush1.msra.mxu0 %v88
    %570 = vmatprep.subr.mxu0 %v91
    %571 = vmatpush1.msra.mxu0 %v90
    %572 = vmatprep.subr.mxu0 %v93
    %573 = vmatpush1.msra.mxu0 %v92
    %574 = vmatprep.subr.mxu0 %v95
    %575 = vmatpush1.msra.mxu0 %v94
    %576 = vmatprep.subr.mxu0 %v97
    %577 = vmatpush1.msra.mxu0 %v96
    %578 = vmatprep.subr.mxu0 %v99
    %579 = vmatpush1.msra.mxu0 %v98
    %580 = vmatprep.subr.mxu0 %v101
    %581 = vmatpush1.msra.mxu0 %v100
    %582 = vmatprep.subr.mxu0 %v103
    %583 = vmatpush1.msra.mxu0 %v102
    %584 = vmatprep.subr.mxu0 %v105
    %585 = vmatpush1.msra.mxu0 %v104
    %586 = vmatprep.subr.mxu0 %v107
    %587 = vmatpush1.msra.mxu0 %v106
    %588 = vmatprep.subr.mxu0 0.0
    %589 = vmatpush1.msra.mxu0 0.0
    %590 = vmatprep.subr.mxu0 0.0
    %591 = vmatpush1.msra.mxu0 0.0
    %592 = vmatprep.subr.mxu0 0.0
    %593 = vmatpush1.msra.mxu0 0.0
    %594 = vmatprep.subr.mxu0 0.0
    %595 = vmatpush1.msra.mxu0 0.0
    %596 = vmatprep.subr.mxu0 0.0
    %597 = vmatpush1.msra.mxu0 0.0
    %598 = vmatprep.subr.mxu0 0.0
    %599 = vmatpush1.msra.mxu0 0.0
    %600 = vmatprep.subr.mxu0 0.0
    %601 = vmatpush1.msra.mxu0 0.0
    %602 = vmatprep.subr.mxu0 0.0
    %603 = vmatpush1.msra.mxu0 0.0
    %604 = vmatprep.subr.mxu0 0.0
    %605 = vmatpush1.msra.mxu0 0.0
    %606 = vmatprep.subr.mxu0 0.0
    %607 = vmatpush1.msra.mxu0 0.0
    %608 = vmatprep.subr.mxu0 0.0
    %609 = vmatpush1.msra.mxu0 0.0
    %610 = vmatprep.subr.mxu0 0.0
    %611 = vmatpush1.msra.mxu0 0.0
    %612 = vmatprep.subr.mxu0 0.0
    %613 = vmatpush1.msra.mxu0 0.0
    %614 = vmatprep.subr.mxu0 0.0
    %615 = vmatpush1.msra.mxu0 0.0
    %616 = vmatprep.subr.mxu0 0.0
    %617 = vmatpush1.msra.mxu0 0.0
    %618 = vmatprep.subr.mxu0 0.0
    %619 = vmatpush1.msra.mxu0 0.0
    %620 = vmatprep.mubr.f32.mxu0 0.0
    %621 = vmatmul.mubr.f32.gmra.mrb[0].mxu0 %v554
    %v622 = vpop.f32.mrb[0].mxu0
    %v623 = vadd.f32 %v324, %v622
    %v624 = vpop.f32.mrb[0].mxu0
    %v625 = vadd.f32 %v328, %v624
    %626 = vdwg.mxu0
    %v627 = vxor.u32 %v623, 2147483648
    %v628 = vxor.u32 %v625, 2147483648
    %v629 = vmul.f32 %v627, 1.442695
    %v630 = vpow.pop %v629
    %v631 = vmul.f32 %v628, 1.442695
    %v632 = vpow.pop %v631
    %v633 = vadd.f32 %v630, 1.0
    %v634 = vadd.f32 %v632, 1.0
    %v635 = vrcp.pop %v633
    %v636 = vmul.f32 1.0, %v635
    %v637 = vrcp.pop %v634
    %v638 = vmul.f32 1.0, %v637
    %v639 = vtanh.pop %v625
    %v640 = vmul.f32 %v636, %v425
    %642 = vrot.lane.b32.xlu0 %v639, 64
    %v643 = vpop.permute.xlu0 %642
    %v645 = vmul.f32 %v636, %v643
    %647 = vrot.lane.b32.xlu0 %v645, 64
    %v648 = vpop.permute.xlu0 %647
    %v650 = vadd.f32 %v640, %v648
    %v651 = vtanh.pop %v650
    %653 = vrot.lane.b32.xlu0 %v651, 64
    %v654 = vpop.permute.xlu0 %653
    %v656 = vmul.f32 %v638, %v654
    %v658 = vrot.slane %v546, 1
    %v659 = vsel %vm212, %v658, 0
    %661 = vmatprep.subr.mxu0 %v61
    %662 = vmatpush1.msra.mxu0 %v60
    %663 = vmatprep.subr.mxu0 %v63
    %664 = vmatpush1.msra.mxu0 %v62
    %665 = vmatprep.subr.mxu0 %v65
    %666 = vmatpush1.msra.mxu0 %v64
    %667 = vmatprep.subr.mxu0 %v67
    %668 = vmatpush1.msra.mxu0 %v66
    %669 = vmatprep.subr.mxu0 %v69
    %670 = vmatpush1.msra.mxu0 %v68
    %671 = vmatprep.subr.mxu0 %v71
    %672 = vmatpush1.msra.mxu0 %v70
    %673 = vmatprep.subr.mxu0 %v73
    %674 = vmatpush1.msra.mxu0 %v72
    %675 = vmatprep.subr.mxu0 %v75
    %676 = vmatpush1.msra.mxu0 %v74
    %677 = vmatprep.subr.mxu0 0.0
    %678 = vmatpush1.msra.mxu0 0.0
    %679 = vmatprep.subr.mxu0 0.0
    %680 = vmatpush1.msra.mxu0 0.0
    %681 = vmatprep.subr.mxu0 0.0
    %682 = vmatpush1.msra.mxu0 0.0
    %683 = vmatprep.subr.mxu0 0.0
    %684 = vmatpush1.msra.mxu0 0.0
    %685 = vmatprep.subr.mxu0 0.0
    %686 = vmatpush1.msra.mxu0 0.0
    %687 = vmatprep.subr.mxu0 0.0
    %688 = vmatpush1.msra.mxu0 0.0
    %689 = vmatprep.subr.mxu0 0.0
    %690 = vmatpush1.msra.mxu0 0.0
    %691 = vmatprep.subr.mxu0 0.0
    %692 = vmatpush1.msra.mxu0 0.0
    %693 = vmatprep.subr.mxu0 0.0
    %694 = vmatpush1.msra.mxu0 0.0
    %695 = vmatprep.subr.mxu0 0.0
    %696 = vmatpush1.msra.mxu0 0.0
    %697 = vmatprep.subr.mxu0 0.0
    %698 = vmatpush1.msra.mxu0 0.0
    %699 = vmatprep.subr.mxu0 0.0
    %700 = vmatpush1.msra.mxu0 0.0
    %701 = vmatprep.subr.mxu0 0.0
    %702 = vmatpush1.msra.mxu0 0.0
    %703 = vmatprep.subr.mxu0 0.0
    %704 = vmatpush1.msra.mxu0 0.0
    %705 = vmatprep.subr.mxu0 0.0
    %706 = vmatpush1.msra.mxu0 0.0
    %707 = vmatprep.subr.mxu0 0.0
    %708 = vmatpush1.msra.mxu0 0.0
    %709 = vmatprep.subr.mxu0 0.0
    %710 = vmatpush1.msra.mxu0 0.0
    %711 = vmatprep.subr.mxu0 0.0
    %712 = vmatpush1.msra.mxu0 0.0
    %713 = vmatprep.subr.mxu0 0.0
    %714 = vmatpush1.msra.mxu0 0.0
    %715 = vmatprep.subr.mxu0 0.0
    %716 = vmatpush1.msra.mxu0 0.0
    %717 = vmatprep.subr.mxu0 0.0
    %718 = vmatpush1.msra.mxu0 0.0
    %719 = vmatprep.subr.mxu0 0.0
    %720 = vmatpush1.msra.mxu0 0.0
    %721 = vmatprep.subr.mxu0 0.0
    %722 = vmatpush1.msra.mxu0 0.0
    %723 = vmatprep.subr.mxu0 0.0
    %724 = vmatpush1.msra.mxu0 0.0
    %725 = vmatprep.mubr.f32.mxu0 0.0
    %726 = vmatmul.mubr.f32.gmra.mrb[0].mxu0 %v659
    %v727 = vpop.f32.mrb[0].mxu0
    %v728 = vadd.f32 0.0, %v727
    %v729 = vpop.f32.mrb[0].mxu0
    %v730 = vadd.f32 0.0, %v729
    %731 = vdwg.mxu0
    %v734 = vrot.slane %v728, 6
    %v735 = vrot.slane %v730, 6
    %v738 = vadd.f32 %v208, %v734
    %v739 = vadd.f32 %v210, %v735
    %v740 = vxor.u32 %v738, 2147483648
    %v741 = vxor.u32 %v739, 2147483648
    %v742 = vmul.f32 %v740, 1.442695
    %v743 = vpow.pop %v742
    %v744 = vmul.f32 %v741, 1.442695
    %v745 = vpow.pop %v744
    %v746 = vadd.f32 %v743, 1.0
    %v747 = vadd.f32 %v745, 1.0
    %v748 = vrcp.pop %v746
    %v749 = vmul.f32 1.0, %v748
    %v750 = vrcp.pop %v747
    %v751 = vmul.f32 1.0, %v750
    %v752 = vtanh.pop %v739
    %v754 = vrot.slane %v540, 7
    %v756 = vmul.f32 %v749, %v754
    %758 = vrot.lane.b32.xlu0 %v752, 64
    %v759 = vpop.permute.xlu0 %758
    %v761 = vmul.f32 %v749, %v759
    %763 = vrot.lane.b32.xlu0 %v761, 64
    %v764 = vpop.permute.xlu0 %763
    %v766 = vadd.f32 %v756, %v764
    %v767 = vtanh.pop %v766
    %769 = vrot.lane.b32.xlu0 %v767, 64
    %v770 = vpop.permute.xlu0 %769
    %v772 = vmul.f32 %v751, %v770
    %v774 = vrot.slane %v656, 6
    %775 = vrot.lane.b32.xlu0 %v774, 64
    %v776 = vpop.permute.xlu0 %775
    %v778 = vsel %vm212, %v772, %v776
    %v780 = vrot.slane %v778, 2
    %782 = vmatprep.subr.mxu0 %v77
    %783 = vmatpush1.msra.mxu0 %v76
    %784 = vmatprep.subr.mxu0 %v79
    %785 = vmatpush1.msra.mxu0 %v78
    %786 = vmatprep.subr.mxu0 %v81
    %787 = vmatpush1.msra.mxu0 %v80
    %788 = vmatprep.subr.mxu0 %v83
    %789 = vmatpush1.msra.mxu0 %v82
    %790 = vmatprep.subr.mxu0 %v85
    %791 = vmatpush1.msra.mxu0 %v84
    %792 = vmatprep.subr.mxu0 %v87
    %793 = vmatpush1.msra.mxu0 %v86
    %794 = vmatprep.subr.mxu0 %v89
    %795 = vmatpush1.msra.mxu0 %v88
    %796 = vmatprep.subr.mxu0 %v91
    %797 = vmatpush1.msra.mxu0 %v90
    %798 = vmatprep.subr.mxu0 %v93
    %799 = vmatpush1.msra.mxu0 %v92
    %800 = vmatprep.subr.mxu0 %v95
    %801 = vmatpush1.msra.mxu0 %v94
    %802 = vmatprep.subr.mxu0 %v97
    %803 = vmatpush1.msra.mxu0 %v96
    %804 = vmatprep.subr.mxu0 %v99
    %805 = vmatpush1.msra.mxu0 %v98
    %806 = vmatprep.subr.mxu0 %v101
    %807 = vmatpush1.msra.mxu0 %v100
    %808 = vmatprep.subr.mxu0 %v103
    %809 = vmatpush1.msra.mxu0 %v102
    %810 = vmatprep.subr.mxu0 %v105
    %811 = vmatpush1.msra.mxu0 %v104
    %812 = vmatprep.subr.mxu0 %v107
    %813 = vmatpush1.msra.mxu0 %v106
    %814 = vmatprep.subr.mxu0 0.0
    %815 = vmatpush1.msra.mxu0 0.0
    %816 = vmatprep.subr.mxu0 0.0
    %817 = vmatpush1.msra.mxu0 0.0
    %818 = vmatprep.subr.mxu0 0.0
    %819 = vmatpush1.msra.mxu0 0.0
    %820 = vmatprep.subr.mxu0 0.0
    %821 = vmatpush1.msra.mxu0 0.0
    %822 = vmatprep.subr.mxu0 0.0
    %823 = vmatpush1.msra.mxu0 0.0
    %824 = vmatprep.subr.mxu0 0.0
    %825 = vmatpush1.msra.mxu0 0.0
    %826 = vmatprep.subr.mxu0 0.0
    %827 = vmatpush1.msra.mxu0 0.0
    %828 = vmatprep.subr.mxu0 0.0
    %829 = vmatpush1.msra.mxu0 0.0
    %830 = vmatprep.subr.mxu0 0.0
    %831 = vmatpush1.msra.mxu0 0.0
    %832 = vmatprep.subr.mxu0 0.0
    %833 = vmatpush1.msra.mxu0 0.0
    %834 = vmatprep.subr.mxu0 0.0
    %835 = vmatpush1.msra.mxu0 0.0
    %836 = vmatprep.subr.mxu0 0.0
    %837 = vmatpush1.msra.mxu0 0.0
    %838 = vmatprep.subr.mxu0 0.0
    %839 = vmatpush1.msra.mxu0 0.0
    %840 = vmatprep.subr.mxu0 0.0
    %841 = vmatpush1.msra.mxu0 0.0
    %842 = vmatprep.subr.mxu0 0.0
    %843 = vmatpush1.msra.mxu0 0.0
    %844 = vmatprep.subr.mxu0 0.0
    %845 = vmatpush1.msra.mxu0 0.0
    %846 = vmatprep.mubr.f32.mxu0 0.0
    %847 = vmatmul.mubr.f32.gmra.mrb[0].mxu0 %v780
    %v848 = vpop.f32.mrb[0].mxu0
    %v849 = vadd.f32 %v324, %v848
    %v850 = vpop.f32.mrb[0].mxu0
    %v851 = vadd.f32 %v328, %v850
    %852 = vdwg.mxu0
    %v853 = vxor.u32 %v849, 2147483648
    %v854 = vxor.u32 %v851, 2147483648
    %v855 = vmul.f32 %v853, 1.442695
    %v856 = vpow.pop %v855
    %v857 = vmul.f32 %v854, 1.442695
    %v858 = vpow.pop %v857
    %v859 = vadd.f32 %v856, 1.0
    %v860 = vadd.f32 %v858, 1.0
    %v861 = vrcp.pop %v859
    %v862 = vmul.f32 1.0, %v861
    %v863 = vrcp.pop %v860
    %v864 = vmul.f32 1.0, %v863
    %v865 = vtanh.pop %v851
    %v866 = vmul.f32 %v862, %v650
    %868 = vrot.lane.b32.xlu0 %v865, 64
    %v869 = vpop.permute.xlu0 %868
    %v871 = vmul.f32 %v862, %v869
    %873 = vrot.lane.b32.xlu0 %v871, 64
    %v874 = vpop.permute.xlu0 %873
    %v876 = vadd.f32 %v866, %v874
    %v877 = vtanh.pop %v876
    %879 = vrot.lane.b32.xlu0 %v877, 64
    %v880 = vpop.permute.xlu0 %879
    %v882 = vmul.f32 %v864, %v880
    %v884 = vrot.slane %v772, 2
    %v885 = vsel %vm212, %v884, 0
    %887 = vmatprep.subr.mxu0 %v61
    %888 = vmatpush1.msra.mxu0 %v60
    %889 = vmatprep.subr.mxu0 %v63
    %890 = vmatpush1.msra.mxu0 %v62
    %891 = vmatprep.subr.mxu0 %v65
    %892 = vmatpush1.msra.mxu0 %v64
    %893 = vmatprep.subr.mxu0 %v67
    %894 = vmatpush1.msra.mxu0 %v66
    %895 = vmatprep.subr.mxu0 %v69
    %896 = vmatpush1.msra.mxu0 %v68
    %897 = vmatprep.subr.mxu0 %v71
    %898 = vmatpush1.msra.mxu0 %v70
    %899 = vmatprep.subr.mxu0 %v73
    %900 = vmatpush1.msra.mxu0 %v72
    %901 = vmatprep.subr.mxu0 %v75
    %902 = vmatpush1.msra.mxu0 %v74
    %903 = vmatprep.subr.mxu0 0.0
    %904 = vmatpush1.msra.mxu0 0.0
    %905 = vmatprep.subr.mxu0 0.0
    %906 = vmatpush1.msra.mxu0 0.0
    %907 = vmatprep.subr.mxu0 0.0
    %908 = vmatpush1.msra.mxu0 0.0
    %909 = vmatprep.subr.mxu0 0.0
    %910 = vmatpush1.msra.mxu0 0.0
    %911 = vmatprep.subr.mxu0 0.0
    %912 = vmatpush1.msra.mxu0 0.0
    %913 = vmatprep.subr.mxu0 0.0
    %914 = vmatpush1.msra.mxu0 0.0
    %915 = vmatprep.subr.mxu0 0.0
    %916 = vmatpush1.msra.mxu0 0.0
    %917 = vmatprep.subr.mxu0 0.0
    %918 = vmatpush1.msra.mxu0 0.0
    %919 = vmatprep.subr.mxu0 0.0
    %920 = vmatpush1.msra.mxu0 0.0
    %921 = vmatprep.subr.mxu0 0.0
    %922 = vmatpush1.msra.mxu0 0.0
    %923 = vmatprep.subr.mxu0 0.0
    %924 = vmatpush1.msra.mxu0 0.0
    %925 = vmatprep.subr.mxu0 0.0
    %926 = vmatpush1.msra.mxu0 0.0
    %927 = vmatprep.subr.mxu0 0.0
    %928 = vmatpush1.msra.mxu0 0.0
    %929 = vmatprep.subr.mxu0 0.0
    %930 = vmatpush1.msra.mxu0 0.0
    %931 = vmatprep.subr.mxu0 0.0
    %932 = vmatpush1.msra.mxu0 0.0
    %933 = vmatprep.subr.mxu0 0.0
    %934 = vmatpush1.msra.mxu0 0.0
    %935 = vmatprep.subr.mxu0 0.0
    %936 = vmatpush1.msra.mxu0 0.0
    %937 = vmatprep.subr.mxu0 0.0
    %938 = vmatpush1.msra.mxu0 0.0
    %939 = vmatprep.subr.mxu0 0.0
    %940 = vmatpush1.msra.mxu0 0.0
    %941 = vmatprep.subr.mxu0 0.0
    %942 = vmatpush1.msra.mxu0 0.0
    %943 = vmatprep.subr.mxu0 0.0
    %944 = vmatpush1.msra.mxu0 0.0
    %945 = vmatprep.subr.mxu0 0.0
    %946 = vmatpush1.msra.mxu0 0.0
    %947 = vmatprep.subr.mxu0 0.0
    %948 = vmatpush1.msra.mxu0 0.0
    %949 = vmatprep.subr.mxu0 0.0
    %950 = vmatpush1.msra.mxu0 0.0
    %951 = vmatprep.mubr.f32.mxu0 0.0
    %952 = vmatmul.mubr.f32.gmra.mrb[0].mxu0 %v885
    %v953 = vpop.f32.mrb[0].mxu0
    %v954 = vadd.f32 0.0, %v953
    %v955 = vpop.f32.mrb[0].mxu0
    %v956 = vadd.f32 0.0, %v955
    %957 = vdwg.mxu0
    %v960 = vrot.slane %v954, 5
    %v961 = vrot.slane %v956, 5
    %v964 = vadd.f32 %v208, %v960
    %v965 = vadd.f32 %v210, %v961
    %v966 = vxor.u32 %v964, 2147483648
    %v967 = vxor.u32 %v965, 2147483648
    %v968 = vmul.f32 %v966, 1.442695
    %v969 = vpow.pop %v968
    %v970 = vmul.f32 %v967, 1.442695
    %v971 = vpow.pop %v970
    %v972 = vadd.f32 %v969, 1.0
    %v973 = vadd.f32 %v971, 1.0
    %v974 = vrcp.pop %v972
    %v975 = vmul.f32 1.0, %v974
    %v976 = vrcp.pop %v973
    %v977 = vmul.f32 1.0, %v976
    %v978 = vtanh.pop %v965
    %v980 = vrot.slane %v766, 7
    %v982 = vmul.f32 %v975, %v980
    %984 = vrot.lane.b32.xlu0 %v978, 64
    %v985 = vpop.permute.xlu0 %984
    %v987 = vmul.f32 %v975, %v985
    %989 = vrot.lane.b32.xlu0 %v987, 64
    %v990 = vpop.permute.xlu0 %989
    %v992 = vadd.f32 %v982, %v990
    %v993 = vtanh.pop %v992
    %995 = vrot.lane.b32.xlu0 %v993, 64
    %v996 = vpop.permute.xlu0 %995
    %v998 = vmul.f32 %v977, %v996
    %v1000 = vrot.slane %v882, 5
    %1001 = vrot.lane.b32.xlu0 %v1000, 64
    %v1002 = vpop.permute.xlu0 %1001
    %v1004 = vsel %vm212, %v998, %v1002
    %v1006 = vrot.slane %v1004, 3
    %1008 = vmatprep.subr.mxu0 %v77
    %1009 = vmatpush1.msra.mxu0 %v76
    %1010 = vmatprep.subr.mxu0 %v79
    %1011 = vmatpush1.msra.mxu0 %v78
    %1012 = vmatprep.subr.mxu0 %v81
    %1013 = vmatpush1.msra.mxu0 %v80
    %1014 = vmatprep.subr.mxu0 %v83
    %1015 = vmatpush1.msra.mxu0 %v82
    %1016 = vmatprep.subr.mxu0 %v85
    %1017 = vmatpush1.msra.mxu0 %v84
    %1018 = vmatprep.subr.mxu0 %v87
    %1019 = vmatpush1.msra.mxu0 %v86
    %1020 = vmatprep.subr.mxu0 %v89
    %1021 = vmatpush1.msra.mxu0 %v88
    %1022 = vmatprep.subr.mxu0 %v91
    %1023 = vmatpush1.msra.mxu0 %v90
    %1024 = vmatprep.subr.mxu0 %v93
    %1025 = vmatpush1.msra.mxu0 %v92
    %1026 = vmatprep.subr.mxu0 %v95
    %1027 = vmatpush1.msra.mxu0 %v94
    %1028 = vmatprep.subr.mxu0 %v97
    %1029 = vmatpush1.msra.mxu0 %v96
    %1030 = vmatprep.subr.mxu0 %v99
    %1031 = vmatpush1.msra.mxu0 %v98
    %1032 = vmatprep.subr.mxu0 %v101
    %1033 = vmatpush1.msra.mxu0 %v100
    %1034 = vmatprep.subr.mxu0 %v103
    %1035 = vmatpush1.msra.mxu0 %v102
    %1036 = vmatprep.subr.mxu0 %v105
    %1037 = vmatpush1.msra.mxu0 %v104
    %1038 = vmatprep.subr.mxu0 %v107
    %1039 = vmatpush1.msra.mxu0 %v106
    %1040 = vmatprep.subr.mxu0 0.0
    %1041 = vmatpush1.msra.mxu0 0.0
    %1042 = vmatprep.subr.mxu0 0.0
    %1043 = vmatpush1.msra.mxu0 0.0
    %1044 = vmatprep.subr.mxu0 0.0
    %1045 = vmatpush1.msra.mxu0 0.0
    %1046 = vmatprep.subr.mxu0 0.0
    %1047 = vmatpush1.msra.mxu0 0.0
    %1048 = vmatprep.subr.mxu0 0.0
    %1049 = vmatpush1.msra.mxu0 0.0
    %1050 = vmatprep.subr.mxu0 0.0
    %1051 = vmatpush1.msra.mxu0 0.0
    %1052 = vmatprep.subr.mxu0 0.0
    %1053 = vmatpush1.msra.mxu0 0.0
    %1054 = vmatprep.subr.mxu0 0.0
    %1055 = vmatpush1.msra.mxu0 0.0
    %1056 = vmatprep.subr.mxu0 0.0
    %1057 = vmatpush1.msra.mxu0 0.0
    %1058 = vmatprep.subr.mxu0 0.0
    %1059 = vmatpush1.msra.mxu0 0.0
    %1060 = vmatprep.subr.mxu0 0.0
    %1061 = vmatpush1.msra.mxu0 0.0
    %1062 = vmatprep.subr.mxu0 0.0
    %1063 = vmatpush1.msra.mxu0 0.0
    %1064 = vmatprep.subr.mxu0 0.0
    %1065 = vmatpush1.msra.mxu0 0.0
    %1066 = vmatprep.subr.mxu0 0.0
    %1067 = vmatpush1.msra.mxu0 0.0
    %1068 = vmatprep.subr.mxu0 0.0
    %1069 = vmatpush1.msra.mxu0 0.0
    %1070 = vmatprep.subr.mxu0 0.0
    %1071 = vmatpush1.msra.mxu0 0.0
    %1072 = vmatprep.mubr.f32.mxu0 0.0
    %1073 = vmatmul.mubr.f32.gmra.mrb[0].mxu0 %v1006
    %v1074 = vpop.f32.mrb[0].mxu0
    %v1075 = vadd.f32 %v324, %v1074
    %v1076 = vpop.f32.mrb[0].mxu0
    %v1077 = vadd.f32 %v328, %v1076
    %1078 = vdwg.mxu0
    %v1079 = vxor.u32 %v1075, 2147483648
    %v1080 = vxor.u32 %v1077, 2147483648
    %v1081 = vmul.f32 %v1079, 1.442695
    %v1082 = vpow.pop %v1081
    %v1083 = vmul.f32 %v1080, 1.442695
    %v1084 = vpow.pop %v1083
    %v1085 = vadd.f32 %v1082, 1.0
    %v1086 = vadd.f32 %v1084, 1.0
    %v1087 = vrcp.pop %v1085
    %v1088 = vmul.f32 1.0, %v1087
    %v1089 = vrcp.pop %v1086
    %v1090 = vmul.f32 1.0, %v1089
    %v1091 = vtanh.pop %v1077
    %v1092 = vmul.f32 %v1088, %v876
    %1094 = vrot.lane.b32.xlu0 %v1091, 64
    %v1095 = vpop.permute.xlu0 %1094
    %v1097 = vmul.f32 %v1088, %v1095
    %1099 = vrot.lane.b32.xlu0 %v1097, 64
    %v1100 = vpop.permute.xlu0 %1099
    %v1102 = vadd.f32 %v1092, %v1100
    %v1103 = vtanh.pop %v1102
    %1105 = vrot.lane.b32.xlu0 %v1103, 64
    %v1106 = vpop.permute.xlu0 %1105
    %v1108 = vmul.f32 %v1090, %v1106
    %v1110 = vrot.slane %v998, 3
    %v1111 = vsel %vm212, %v1110, 0
    %1113 = vmatprep.subr.mxu0 %v61
    %1114 = vmatpush1.msra.mxu0 %v60
    %1115 = vmatprep.subr.mxu0 %v63
    %1116 = vmatpush1.msra.mxu0 %v62
    %1117 = vmatprep.subr.mxu0 %v65
    %1118 = vmatpush1.msra.mxu0 %v64
    %1119 = vmatprep.subr.mxu0 %v67
    %1120 = vmatpush1.msra.mxu0 %v66
    %1121 = vmatprep.subr.mxu0 %v69
    %1122 = vmatpush1.msra.mxu0 %v68
    %1123 = vmatprep.subr.mxu0 %v71
    %1124 = vmatpush1.msra.mxu0 %v70
    %1125 = vmatprep.subr.mxu0 %v73
    %1126 = vmatpush1.msra.mxu0 %v72
    %1127 = vmatprep.subr.mxu0 %v75
    %1128 = vmatpush1.msra.mxu0 %v74
    %1129 = vmatprep.subr.mxu0 0.0
    %1130 = vmatpush1.msra.mxu0 0.0
    %1131 = vmatprep.subr.mxu0 0.0
    %1132 = vmatpush1.msra.mxu0 0.0
    %1133 = vmatprep.subr.mxu0 0.0
    %1134 = vmatpush1.msra.mxu0 0.0
    %1135 = vmatprep.subr.mxu0 0.0
    %1136 = vmatpush1.msra.mxu0 0.0
    %1137 = vmatprep.subr.mxu0 0.0
    %1138 = vmatpush1.msra.mxu0 0.0
    %1139 = vmatprep.subr.mxu0 0.0
    %1140 = vmatpush1.msra.mxu0 0.0
    %1141 = vmatprep.subr.mxu0 0.0
    %1142 = vmatpush1.msra.mxu0 0.0
    %1143 = vmatprep.subr.mxu0 0.0
    %1144 = vmatpush1.msra.mxu0 0.0
    %1145 = vmatprep.subr.mxu0 0.0
    %1146 = vmatpush1.msra.mxu0 0.0
    %1147 = vmatprep.subr.mxu0 0.0
    %1148 = vmatpush1.msra.mxu0 0.0
    %1149 = vmatprep.subr.mxu0 0.0
    %1150 = vmatpush1.msra.mxu0 0.0
    %1151 = vmatprep.subr.mxu0 0.0
    %1152 = vmatpush1.msra.mxu0 0.0
    %1153 = vmatprep.subr.mxu0 0.0
    %1154 = vmatpush1.msra.mxu0 0.0
    %1155 = vmatprep.subr.mxu0 0.0
    %1156 = vmatpush1.msra.mxu0 0.0
    %1157 = vmatprep.subr.mxu0 0.0
    %1158 = vmatpush1.msra.mxu0 0.0
    %1159 = vmatprep.subr.mxu0 0.0
    %1160 = vmatpush1.msra.mxu0 0.0
    %1161 = vmatprep.subr.mxu0 0.0
    %1162 = vmatpush1.msra.mxu0 0.0
    %1163 = vmatprep.subr.mxu0 0.0
    %1164 = vmatpush1.msra.mxu0 0.0
    %1165 = vmatprep.subr.mxu0 0.0
    %1166 = vmatpush1.msra.mxu0 0.0
    %1167 = vmatprep.subr.mxu0 0.0
    %1168 = vmatpush1.msra.mxu0 0.0
    %1169 = vmatprep.subr.mxu0 0.0
    %1170 = vmatpush1.msra.mxu0 0.0
    %1171 = vmatprep.subr.mxu0 0.0
    %1172 = vmatpush1.msra.mxu0 0.0
    %1173 = vmatprep.subr.mxu0 0.0
    %1174 = vmatpush1.msra.mxu0 0.0
    %1175 = vmatprep.subr.mxu0 0.0
    %1176 = vmatpush1.msra.mxu0 0.0
    %1177 = vmatprep.mubr.f32.mxu0 0.0
    %1178 = vmatmul.mubr.f32.gmra.mrb[0].mxu0 %v1111
    %v1179 = vpop.f32.mrb[0].mxu0
    %v1180 = vadd.f32 0.0, %v1179
    %v1181 = vpop.f32.mrb[0].mxu0
    %v1182 = vadd.f32 0.0, %v1181
    %1183 = vdwg.mxu0
    %v1186 = vrot.slane %v1180, 4
    %v1187 = vrot.slane %v1182, 4
    %v1190 = vadd.f32 %v208, %v1186
    %v1191 = vadd.f32 %v210, %v1187
    %v1192 = vxor.u32 %v1190, 2147483648
    %v1193 = vxor.u32 %v1191, 2147483648
    %v1194 = vmul.f32 %v1192, 1.442695
    %v1195 = vpow.pop %v1194
    %v1196 = vmul.f32 %v1193, 1.442695
    %v1197 = vpow.pop %v1196
    %v1198 = vadd.f32 %v1195, 1.0
    %v1199 = vadd.f32 %v1197, 1.0
    %v1200 = vrcp.pop %v1198
    %v1201 = vmul.f32 1.0, %v1200
    %v1202 = vrcp.pop %v1199
    %v1203 = vmul.f32 1.0, %v1202
    %v1204 = vtanh.pop %v1191
    %v1206 = vrot.slane %v992, 7
    %v1208 = vmul.f32 %v1201, %v1206
    %1210 = vrot.lane.b32.xlu0 %v1204, 64
    %v1211 = vpop.permute.xlu0 %1210
    %v1213 = vmul.f32 %v1201, %v1211
    %1215 = vrot.lane.b32.xlu0 %v1213, 64
    %v1216 = vpop.permute.xlu0 %1215
    %v1218 = vadd.f32 %v1208, %v1216
    %v1219 = vtanh.pop %v1218
    %1221 = vrot.lane.b32.xlu0 %v1219, 64
    %v1222 = vpop.permute.xlu0 %1221
    %v1224 = vmul.f32 %v1203, %v1222
    %v1226 = vrot.slane %v1108, 4
    %1227 = vrot.lane.b32.xlu0 %v1226, 64
    %v1228 = vpop.permute.xlu0 %1227
    %v1230 = vsel %vm212, %v1224, %v1228
    %v1232 = vrot.slane %v1230, 4
    %1234 = vmatprep.subr.mxu0 %v77
    %1235 = vmatpush1.msra.mxu0 %v76
    %1236 = vmatprep.subr.mxu0 %v79
    %1237 = vmatpush1.msra.mxu0 %v78
    %1238 = vmatprep.subr.mxu0 %v81
    %1239 = vmatpush1.msra.mxu0 %v80
    %1240 = vmatprep.subr.mxu0 %v83
    %1241 = vmatpush1.msra.mxu0 %v82
    %1242 = vmatprep.subr.mxu0 %v85
    %1243 = vmatpush1.msra.mxu0 %v84
    %1244 = vmatprep.subr.mxu0 %v87
    %1245 = vmatpush1.msra.mxu0 %v86
    %1246 = vmatprep.subr.mxu0 %v89
    %1247 = vmatpush1.msra.mxu0 %v88
    %1248 = vmatprep.subr.mxu0 %v91
    %1249 = vmatpush1.msra.mxu0 %v90
    %1250 = vmatprep.subr.mxu0 %v93
    %1251 = vmatpush1.msra.mxu0 %v92
    %1252 = vmatprep.subr.mxu0 %v95
    %1253 = vmatpush1.msra.mxu0 %v94
    %1254 = vmatprep.subr.mxu0 %v97
    %1255 = vmatpush1.msra.mxu0 %v96
    %1256 = vmatprep.subr.mxu0 %v99
    %1257 = vmatpush1.msra.mxu0 %v98
    %1258 = vmatprep.subr.mxu0 %v101
    %1259 = vmatpush1.msra.mxu0 %v100
    %1260 = vmatprep.subr.mxu0 %v103
    %1261 = vmatpush1.msra.mxu0 %v102
    %1262 = vmatprep.subr.mxu0 %v105
    %1263 = vmatpush1.msra.mxu0 %v104
    %1264 = vmatprep.subr.mxu0 %v107
    %1265 = vmatpush1.msra.mxu0 %v106
    %1266 = vmatprep.subr.mxu0 0.0
    %1267 = vmatpush1.msra.mxu0 0.0
    %1268 = vmatprep.subr.mxu0 0.0
    %1269 = vmatpush1.msra.mxu0 0.0
    %1270 = vmatprep.subr.mxu0 0.0
    %1271 = vmatpush1.msra.mxu0 0.0
    %1272 = vmatprep.subr.mxu0 0.0
    %1273 = vmatpush1.msra.mxu0 0.0
    %1274 = vmatprep.subr.mxu0 0.0
    %1275 = vmatpush1.msra.mxu0 0.0
    %1276 = vmatprep.subr.mxu0 0.0
    %1277 = vmatpush1.msra.mxu0 0.0
    %1278 = vmatprep.subr.mxu0 0.0
    %1279 = vmatpush1.msra.mxu0 0.0
    %1280 = vmatprep.subr.mxu0 0.0
    %1281 = vmatpush1.msra.mxu0 0.0
    %1282 = vmatprep.subr.mxu0 0.0
    %1283 = vmatpush1.msra.mxu0 0.0
    %1284 = vmatprep.subr.mxu0 0.0
    %1285 = vmatpush1.msra.mxu0 0.0
    %1286 = vmatprep.subr.mxu0 0.0
    %1287 = vmatpush1.msra.mxu0 0.0
    %1288 = vmatprep.subr.mxu0 0.0
    %1289 = vmatpush1.msra.mxu0 0.0
    %1290 = vmatprep.subr.mxu0 0.0
    %1291 = vmatpush1.msra.mxu0 0.0
    %1292 = vmatprep.subr.mxu0 0.0
    %1293 = vmatpush1.msra.mxu0 0.0
    %1294 = vmatprep.subr.mxu0 0.0
    %1295 = vmatpush1.msra.mxu0 0.0
    %1296 = vmatprep.subr.mxu0 0.0
    %1297 = vmatpush1.msra.mxu0 0.0
    %1298 = vmatprep.mubr.f32.mxu0 0.0
    %1299 = vmatmul.mubr.f32.gmra.mrb[0].mxu0 %v1232
    %v1300 = vpop.f32.mrb[0].mxu0
    %v1301 = vadd.f32 %v324, %v1300
    %v1302 = vpop.f32.mrb[0].mxu0
    %v1303 = vadd.f32 %v328, %v1302
    %1304 = vdwg.mxu0
    %v1305 = vxor.u32 %v1301, 2147483648
    %v1306 = vxor.u32 %v1303, 2147483648
    %v1307 = vmul.f32 %v1305, 1.442695
    %v1308 = vpow.pop %v1307
    %v1309 = vmul.f32 %v1306, 1.442695
    %v1310 = vpow.pop %v1309
    %v1311 = vadd.f32 %v1308, 1.0
    %v1312 = vadd.f32 %v1310, 1.0
    %v1313 = vrcp.pop %v1311
    %v1314 = vmul.f32 1.0, %v1313
    %v1315 = vrcp.pop %v1312
    %v1316 = vmul.f32 1.0, %v1315
    %v1317 = vtanh.pop %v1303
    %v1318 = vmul.f32 %v1314, %v1102
    %1320 = vrot.lane.b32.xlu0 %v1317, 64
    %v1321 = vpop.permute.xlu0 %1320
    %v1323 = vmul.f32 %v1314, %v1321
    %1325 = vrot.lane.b32.xlu0 %v1323, 64
    %v1326 = vpop.permute.xlu0 %1325
    %v1328 = vadd.f32 %v1318, %v1326
    %v1329 = vtanh.pop %v1328
    %1331 = vrot.lane.b32.xlu0 %v1329, 64
    %v1332 = vpop.permute.xlu0 %1331
    %v1334 = vmul.f32 %v1316, %v1332
    %v1336 = vrot.slane %v1224, 4
    %v1337 = vsel %vm212, %v1336, 0
    %1339 = vmatprep.subr.mxu0 %v61
    %1340 = vmatpush1.msra.mxu0 %v60
    %1341 = vmatprep.subr.mxu0 %v63
    %1342 = vmatpush1.msra.mxu0 %v62
    %1343 = vmatprep.subr.mxu0 %v65
    %1344 = vmatpush1.msra.mxu0 %v64
    %1345 = vmatprep.subr.mxu0 %v67
    %1346 = vmatpush1.msra.mxu0 %v66
    %1347 = vmatprep.subr.mxu0 %v69
    %1348 = vmatpush1.msra.mxu0 %v68
    %1349 = vmatprep.subr.mxu0 %v71
    %1350 = vmatpush1.msra.mxu0 %v70
    %1351 = vmatprep.subr.mxu0 %v73
    %1352 = vmatpush1.msra.mxu0 %v72
    %1353 = vmatprep.subr.mxu0 %v75
    %1354 = vmatpush1.msra.mxu0 %v74
    %1355 = vmatprep.subr.mxu0 0.0
    %1356 = vmatpush1.msra.mxu0 0.0
    %1357 = vmatprep.subr.mxu0 0.0
    %1358 = vmatpush1.msra.mxu0 0.0
    %1359 = vmatprep.subr.mxu0 0.0
    %1360 = vmatpush1.msra.mxu0 0.0
    %1361 = vmatprep.subr.mxu0 0.0
    %1362 = vmatpush1.msra.mxu0 0.0
    %1363 = vmatprep.subr.mxu0 0.0
    %1364 = vmatpush1.msra.mxu0 0.0
    %1365 = vmatprep.subr.mxu0 0.0
    %1366 = vmatpush1.msra.mxu0 0.0
    %1367 = vmatprep.subr.mxu0 0.0
    %1368 = vmatpush1.msra.mxu0 0.0
    %1369 = vmatprep.subr.mxu0 0.0
    %1370 = vmatpush1.msra.mxu0 0.0
    %1371 = vmatprep.subr.mxu0 0.0
    %1372 = vmatpush1.msra.mxu0 0.0
    %1373 = vmatprep.subr.mxu0 0.0
    %1374 = vmatpush1.msra.mxu0 0.0
    %1375 = vmatprep.subr.mxu0 0.0
    %1376 = vmatpush1.msra.mxu0 0.0
    %1377 = vmatprep.subr.mxu0 0.0
    %1378 = vmatpush1.msra.mxu0 0.0
    %1379 = vmatprep.subr.mxu0 0.0
    %1380 = vmatpush1.msra.mxu0 0.0
    %1381 = vmatprep.subr.mxu0 0.0
    %1382 = vmatpush1.msra.mxu0 0.0
    %1383 = vmatprep.subr.mxu0 0.0
    %1384 = vmatpush1.msra.mxu0 0.0
    %1385 = vmatprep.subr.mxu0 0.0
    %1386 = vmatpush1.msra.mxu0 0.0
    %1387 = vmatprep.subr.mxu0 0.0
    %1388 = vmatpush1.msra.mxu0 0.0
    %1389 = vmatprep.subr.mxu0 0.0
    %1390 = vmatpush1.msra.mxu0 0.0
    %1391 = vmatprep.subr.mxu0 0.0
    %1392 = vmatpush1.msra.mxu0 0.0
    %1393 = vmatprep.subr.mxu0 0.0
    %1394 = vmatpush1.msra.mxu0 0.0
    %1395 = vmatprep.subr.mxu0 0.0
    %1396 = vmatpush1.msra.mxu0 0.0
    %1397 = vmatprep.subr.mxu0 0.0
    %1398 = vmatpush1.msra.mxu0 0.0
    %1399 = vmatprep.subr.mxu0 0.0
    %1400 = vmatpush1.msra.mxu0 0.0
    %1401 = vmatprep.subr.mxu0 0.0
    %1402 = vmatpush1.msra.mxu0 0.0
    %1403 = vmatprep.mubr.f32.mxu0 0.0
    %1404 = vmatmul.mubr.f32.gmra.mrb[0].mxu0 %v1337
    %v1405 = vpop.f32.mrb[0].mxu0
    %v1406 = vadd.f32 0.0, %v1405
    %v1407 = vpop.f32.mrb[0].mxu0
    %v1408 = vadd.f32 0.0, %v1407
    %1409 = vdwg.mxu0
    %v1412 = vrot.slane %v1406, 3
    %v1413 = vrot.slane %v1408, 3
    %v1416 = vadd.f32 %v208, %v1412
    %v1417 = vadd.f32 %v210, %v1413
    %v1418 = vxor.u32 %v1416, 2147483648
    %v1419 = vxor.u32 %v1417, 2147483648
    %v1420 = vmul.f32 %v1418, 1.442695
    %v1421 = vpow.pop %v1420
    %v1422 = vmul.f32 %v1419, 1.442695
    %v1423 = vpow.pop %v1422
    %v1424 = vadd.f32 %v1421, 1.0
    %v1425 = vadd.f32 %v1423, 1.0
    %v1426 = vrcp.pop %v1424
    %v1427 = vmul.f32 1.0, %v1426
    %v1428 = vrcp.pop %v1425
    %v1429 = vmul.f32 1.0, %v1428
    %v1430 = vtanh.pop %v1417
    %v1432 = vrot.slane %v1218, 7
    %v1434 = vmul.f32 %v1427, %v1432
    %1436 = vrot.lane.b32.xlu0 %v1430, 64
    %v1437 = vpop.permute.xlu0 %1436
    %v1439 = vmul.f32 %v1427, %v1437
    %1441 = vrot.lane.b32.xlu0 %v1439, 64
    %v1442 = vpop.permute.xlu0 %1441
    %v1444 = vadd.f32 %v1434, %v1442
    %v1445 = vtanh.pop %v1444
    %1447 = vrot.lane.b32.xlu0 %v1445, 64
    %v1448 = vpop.permute.xlu0 %1447
    %v1450 = vmul.f32 %v1429, %v1448
    %v1452 = vrot.slane %v1334, 3
    %1453 = vrot.lane.b32.xlu0 %v1452, 64
    %v1454 = vpop.permute.xlu0 %1453
    %v1456 = vsel %vm212, %v1450, %v1454
    %v1458 = vrot.slane %v1456, 5
    %1460 = vmatprep.subr.mxu0 %v77
    %1461 = vmatpush1.msra.mxu0 %v76
    %1462 = vmatprep.subr.mxu0 %v79
    %1463 = vmatpush1.msra.mxu0 %v78
    %1464 = vmatprep.subr.mxu0 %v81
    %1465 = vmatpush1.msra.mxu0 %v80
    %1466 = vmatprep.subr.mxu0 %v83
    %1467 = vmatpush1.msra.mxu0 %v82
    %1468 = vmatprep.subr.mxu0 %v85
    %1469 = vmatpush1.msra.mxu0 %v84
    %1470 = vmatprep.subr.mxu0 %v87
    %1471 = vmatpush1.msra.mxu0 %v86
    %1472 = vmatprep.subr.mxu0 %v89
    %1473 = vmatpush1.msra.mxu0 %v88
    %1474 = vmatprep.subr.mxu0 %v91
    %1475 = vmatpush1.msra.mxu0 %v90
    %1476 = vmatprep.subr.mxu0 %v93
    %1477 = vmatpush1.msra.mxu0 %v92
    %1478 = vmatprep.subr.mxu0 %v95
    %1479 = vmatpush1.msra.mxu0 %v94
    %1480 = vmatprep.subr.mxu0 %v97
    %1481 = vmatpush1.msra.mxu0 %v96
    %1482 = vmatprep.subr.mxu0 %v99
    %1483 = vmatpush1.msra.mxu0 %v98
    %1484 = vmatprep.subr.mxu0 %v101
    %1485 = vmatpush1.msra.mxu0 %v100
    %1486 = vmatprep.subr.mxu0 %v103
    %1487 = vmatpush1.msra.mxu0 %v102
    %1488 = vmatprep.subr.mxu0 %v105
    %1489 = vmatpush1.msra.mxu0 %v104
    %1490 = vmatprep.subr.mxu0 %v107
    %1491 = vmatpush1.msra.mxu0 %v106
    %1492 = vmatprep.subr.mxu0 0.0
    %1493 = vmatpush1.msra.mxu0 0.0
    %1494 = vmatprep.subr.mxu0 0.0
    %1495 = vmatpush1.msra.mxu0 0.0
    %1496 = vmatprep.subr.mxu0 0.0
    %1497 = vmatpush1.msra.mxu0 0.0
    %1498 = vmatprep.subr.mxu0 0.0
    %1499 = vmatpush1.msra.mxu0 0.0
    %1500 = vmatprep.subr.mxu0 0.0
    %1501 = vmatpush1.msra.mxu0 0.0
    %1502 = vmatprep.subr.mxu0 0.0
    %1503 = vmatpush1.msra.mxu0 0.0
    %1504 = vmatprep.subr.mxu0 0.0
    %1505 = vmatpush1.msra.mxu0 0.0
    %1506 = vmatprep.subr.mxu0 0.0
    %1507 = vmatpush1.msra.mxu0 0.0
    %1508 = vmatprep.subr.mxu0 0.0
    %1509 = vmatpush1.msra.mxu0 0.0
    %1510 = vmatprep.subr.mxu0 0.0
    %1511 = vmatpush1.msra.mxu0 0.0
    %1512 = vmatprep.subr.mxu0 0.0
    %1513 = vmatpush1.msra.mxu0 0.0
    %1514 = vmatprep.subr.mxu0 0.0
    %1515 = vmatpush1.msra.mxu0 0.0
    %1516 = vmatprep.subr.mxu0 0.0
    %1517 = vmatpush1.msra.mxu0 0.0
    %1518 = vmatprep.subr.mxu0 0.0
    %1519 = vmatpush1.msra.mxu0 0.0
    %1520 = vmatprep.subr.mxu0 0.0
    %1521 = vmatpush1.msra.mxu0 0.0
    %1522 = vmatprep.subr.mxu0 0.0
    %1523 = vmatpush1.msra.mxu0 0.0
    %1524 = vmatprep.mubr.f32.mxu0 0.0
    %1525 = vmatmul.mubr.f32.gmra.mrb[0].mxu0 %v1458
    %v1526 = vpop.f32.mrb[0].mxu0
    %v1527 = vadd.f32 %v324, %v1526
    %v1528 = vpop.f32.mrb[0].mxu0
    %v1529 = vadd.f32 %v328, %v1528
    %1530 = vdwg.mxu0
    %v1531 = vxor.u32 %v1527, 2147483648
    %v1532 = vxor.u32 %v1529, 2147483648
    %v1533 = vmul.f32 %v1531, 1.442695
    %v1534 = vpow.pop %v1533
    %v1535 = vmul.f32 %v1532, 1.442695
    %v1536 = vpow.pop %v1535
    %v1537 = vadd.f32 %v1534, 1.0
    %v1538 = vadd.f32 %v1536, 1.0
    %v1539 = vrcp.pop %v1537
    %v1540 = vmul.f32 1.0, %v1539
    %v1541 = vrcp.pop %v1538
    %v1542 = vmul.f32 1.0, %v1541
    %v1543 = vtanh.pop %v1529
    %v1544 = vmul.f32 %v1540, %v1328
    %1546 = vrot.lane.b32.xlu0 %v1543, 64
    %v1547 = vpop.permute.xlu0 %1546
    %v1549 = vmul.f32 %v1540, %v1547
    %1551 = vrot.lane.b32.xlu0 %v1549, 64
    %v1552 = vpop.permute.xlu0 %1551
    %v1554 = vadd.f32 %v1544, %v1552
    %v1555 = vtanh.pop %v1554
    %1557 = vrot.lane.b32.xlu0 %v1555, 64
    %v1558 = vpop.permute.xlu0 %1557
    %v1560 = vmul.f32 %v1542, %v1558
    %v1562 = vrot.slane %v1450, 5
    %v1563 = vsel %vm212, %v1562, 0
    %1565 = vmatprep.subr.mxu0 %v61
    %1566 = vmatpush1.msra.mxu0 %v60
    %1567 = vmatprep.subr.mxu0 %v63
    %1568 = vmatpush1.msra.mxu0 %v62
    %1569 = vmatprep.subr.mxu0 %v65
    %1570 = vmatpush1.msra.mxu0 %v64
    %1571 = vmatprep.subr.mxu0 %v67
    %1572 = vmatpush1.msra.mxu0 %v66
    %1573 = vmatprep.subr.mxu0 %v69
    %1574 = vmatpush1.msra.mxu0 %v68
    %1575 = vmatprep.subr.mxu0 %v71
    %1576 = vmatpush1.msra.mxu0 %v70
    %1577 = vmatprep.subr.mxu0 %v73
    %1578 = vmatpush1.msra.mxu0 %v72
    %1579 = vmatprep.subr.mxu0 %v75
    %1580 = vmatpush1.msra.mxu0 %v74
    %1581 = vmatprep.subr.mxu0 0.0
    %1582 = vmatpush1.msra.mxu0 0.0
    %1583 = vmatprep.subr.mxu0 0.0
    %1584 = vmatpush1.msra.mxu0 0.0
    %1585 = vmatprep.subr.mxu0 0.0
    %1586 = vmatpush1.msra.mxu0 0.0
    %1587 = vmatprep.subr.mxu0 0.0
    %1588 = vmatpush1.msra.mxu0 0.0
    %1589 = vmatprep.subr.mxu0 0.0
    %1590 = vmatpush1.msra.mxu0 0.0
    %1591 = vmatprep.subr.mxu0 0.0
    %1592 = vmatpush1.msra.mxu0 0.0
    %1593 = vmatprep.subr.mxu0 0.0
    %1594 = vmatpush1.msra.mxu0 0.0
    %1595 = vmatprep.subr.mxu0 0.0
    %1596 = vmatpush1.msra.mxu0 0.0
    %1597 = vmatprep.subr.mxu0 0.0
    %1598 = vmatpush1.msra.mxu0 0.0
    %1599 = vmatprep.subr.mxu0 0.0
    %1600 = vmatpush1.msra.mxu0 0.0
    %1601 = vmatprep.subr.mxu0 0.0
    %1602 = vmatpush1.msra.mxu0 0.0
    %1603 = vmatprep.subr.mxu0 0.0
    %1604 = vmatpush1.msra.mxu0 0.0
    %1605 = vmatprep.subr.mxu0 0.0
    %1606 = vmatpush1.msra.mxu0 0.0
    %1607 = vmatprep.subr.mxu0 0.0
    %1608 = vmatpush1.msra.mxu0 0.0
    %1609 = vmatprep.subr.mxu0 0.0
    %1610 = vmatpush1.msra.mxu0 0.0
    %1611 = vmatprep.subr.mxu0 0.0
    %1612 = vmatpush1.msra.mxu0 0.0
    %1613 = vmatprep.subr.mxu0 0.0
    %1614 = vmatpush1.msra.mxu0 0.0
    %1615 = vmatprep.subr.mxu0 0.0
    %1616 = vmatpush1.msra.mxu0 0.0
    %1617 = vmatprep.subr.mxu0 0.0
    %1618 = vmatpush1.msra.mxu0 0.0
    %1619 = vmatprep.subr.mxu0 0.0
    %1620 = vmatpush1.msra.mxu0 0.0
    %1621 = vmatprep.subr.mxu0 0.0
    %1622 = vmatpush1.msra.mxu0 0.0
    %1623 = vmatprep.subr.mxu0 0.0
    %1624 = vmatpush1.msra.mxu0 0.0
    %1625 = vmatprep.subr.mxu0 0.0
    %1626 = vmatpush1.msra.mxu0 0.0
    %1627 = vmatprep.subr.mxu0 0.0
    %1628 = vmatpush1.msra.mxu0 0.0
    %1629 = vmatprep.mubr.f32.mxu0 0.0
    %1630 = vmatmul.mubr.f32.gmra.mrb[0].mxu0 %v1563
    %v1631 = vpop.f32.mrb[0].mxu0
    %v1632 = vadd.f32 0.0, %v1631
    %v1633 = vpop.f32.mrb[0].mxu0
    %v1634 = vadd.f32 0.0, %v1633
    %1635 = vdwg.mxu0
    %v1638 = vrot.slane %v1632, 2
    %v1639 = vrot.slane %v1634, 2
    %v1642 = vadd.f32 %v208, %v1638
    %v1643 = vadd.f32 %v210, %v1639
    %v1644 = vxor.u32 %v1642, 2147483648
    %v1645 = vxor.u32 %v1643, 2147483648
    %v1646 = vmul.f32 %v1644, 1.442695
    %v1647 = vpow.pop %v1646
    %v1648 = vmul.f32 %v1645, 1.442695
    %v1649 = vpow.pop %v1648
    %v1650 = vadd.f32 %v1647, 1.0
    %v1651 = vadd.f32 %v1649, 1.0
    %v1652 = vrcp.pop %v1650
    %v1653 = vmul.f32 1.0, %v1652
    %v1654 = vrcp.pop %v1651
    %v1655 = vmul.f32 1.0, %v1654
    %v1656 = vtanh.pop %v1643
    %v1658 = vrot.slane %v1444, 7
    %v1660 = vmul.f32 %v1653, %v1658
    %1662 = vrot.lane.b32.xlu0 %v1656, 64
    %v1663 = vpop.permute.xlu0 %1662
    %v1665 = vmul.f32 %v1653, %v1663
    %1667 = vrot.lane.b32.xlu0 %v1665, 64
    %v1668 = vpop.permute.xlu0 %1667
    %v1670 = vadd.f32 %v1660, %v1668
    %v1671 = vtanh.pop %v1670
    %1673 = vrot.lane.b32.xlu0 %v1671, 64
    %v1674 = vpop.permute.xlu0 %1673
    %v1676 = vmul.f32 %v1655, %v1674
    %v1678 = vrot.slane %v1560, 2
    %1679 = vrot.lane.b32.xlu0 %v1678, 64
    %v1680 = vpop.permute.xlu0 %1679
    %v1682 = vsel %vm212, %v1676, %v1680
    %v1684 = vrot.slane %v1682, 6
    %1686 = vmatprep.subr.mxu0 %v77
    %1687 = vmatpush1.msra.mxu0 %v76
    %1688 = vmatprep.subr.mxu0 %v79
    %1689 = vmatpush1.msra.mxu0 %v78
    %1690 = vmatprep.subr.mxu0 %v81
    %1691 = vmatpush1.msra.mxu0 %v80
    %1692 = vmatprep.subr.mxu0 %v83
    %1693 = vmatpush1.msra.mxu0 %v82
    %1694 = vmatprep.subr.mxu0 %v85
    %1695 = vmatpush1.msra.mxu0 %v84
    %1696 = vmatprep.subr.mxu0 %v87
    %1697 = vmatpush1.msra.mxu0 %v86
    %1698 = vmatprep.subr.mxu0 %v89
    %1699 = vmatpush1.msra.mxu0 %v88
    %1700 = vmatprep.subr.mxu0 %v91
    %1701 = vmatpush1.msra.mxu0 %v90
    %1702 = vmatprep.subr.mxu0 %v93
    %1703 = vmatpush1.msra.mxu0 %v92
    %1704 = vmatprep.subr.mxu0 %v95
    %1705 = vmatpush1.msra.mxu0 %v94
    %1706 = vmatprep.subr.mxu0 %v97
    %1707 = vmatpush1.msra.mxu0 %v96
    %1708 = vmatprep.subr.mxu0 %v99
    %1709 = vmatpush1.msra.mxu0 %v98
    %1710 = vmatprep.subr.mxu0 %v101
    %1711 = vmatpush1.msra.mxu0 %v100
    %1712 = vmatprep.subr.mxu0 %v103
    %1713 = vmatpush1.msra.mxu0 %v102
    %1714 = vmatprep.subr.mxu0 %v105
    %1715 = vmatpush1.msra.mxu0 %v104
    %1716 = vmatprep.subr.mxu0 %v107
    %1717 = vmatpush1.msra.mxu0 %v106
    %1718 = vmatprep.subr.mxu0 0.0
    %1719 = vmatpush1.msra.mxu0 0.0
    %1720 = vmatprep.subr.mxu0 0.0
    %1721 = vmatpush1.msra.mxu0 0.0
    %1722 = vmatprep.subr.mxu0 0.0
    %1723 = vmatpush1.msra.mxu0 0.0
    %1724 = vmatprep.subr.mxu0 0.0
    %1725 = vmatpush1.msra.mxu0 0.0
    %1726 = vmatprep.subr.mxu0 0.0
    %1727 = vmatpush1.msra.mxu0 0.0
    %1728 = vmatprep.subr.mxu0 0.0
    %1729 = vmatpush1.msra.mxu0 0.0
    %1730 = vmatprep.subr.mxu0 0.0
    %1731 = vmatpush1.msra.mxu0 0.0
    %1732 = vmatprep.subr.mxu0 0.0
    %1733 = vmatpush1.msra.mxu0 0.0
    %1734 = vmatprep.subr.mxu0 0.0
    %1735 = vmatpush1.msra.mxu0 0.0
    %1736 = vmatprep.subr.mxu0 0.0
    %1737 = vmatpush1.msra.mxu0 0.0
    %1738 = vmatprep.subr.mxu0 0.0
    %1739 = vmatpush1.msra.mxu0 0.0
    %1740 = vmatprep.subr.mxu0 0.0
    %1741 = vmatpush1.msra.mxu0 0.0
    %1742 = vmatprep.subr.mxu0 0.0
    %1743 = vmatpush1.msra.mxu0 0.0
    %1744 = vmatprep.subr.mxu0 0.0
    %1745 = vmatpush1.msra.mxu0 0.0
    %1746 = vmatprep.subr.mxu0 0.0
    %1747 = vmatpush1.msra.mxu0 0.0
    %1748 = vmatprep.subr.mxu0 0.0
    %1749 = vmatpush1.msra.mxu0 0.0
    %1750 = vmatprep.mubr.f32.mxu0 0.0
    %1751 = vmatmul.mubr.f32.gmra.mrb[0].mxu0 %v1684
    %v1752 = vpop.f32.mrb[0].mxu0
    %v1753 = vadd.f32 %v324, %v1752
    %v1754 = vpop.f32.mrb[0].mxu0
    %v1755 = vadd.f32 %v328, %v1754
    %1756 = vdwg.mxu0
    %v1757 = vxor.u32 %v1753, 2147483648
    %v1758 = vxor.u32 %v1755, 2147483648
    %v1759 = vmul.f32 %v1757, 1.442695
    %v1760 = vpow.pop %v1759
    %v1761 = vmul.f32 %v1758, 1.442695
    %v1762 = vpow.pop %v1761
    %v1763 = vadd.f32 %v1760, 1.0
    %v1764 = vadd.f32 %v1762, 1.0
    %v1765 = vrcp.pop %v1763
    %v1766 = vmul.f32 1.0, %v1765
    %v1767 = vrcp.pop %v1764
    %v1768 = vmul.f32 1.0, %v1767
    %v1769 = vtanh.pop %v1755
    %v1770 = vmul.f32 %v1766, %v1554
    %1772 = vrot.lane.b32.xlu0 %v1769, 64
    %v1773 = vpop.permute.xlu0 %1772
    %v1775 = vmul.f32 %v1766, %v1773
    %1777 = vrot.lane.b32.xlu0 %v1775, 64
    %v1778 = vpop.permute.xlu0 %1777
    %v1780 = vadd.f32 %v1770, %v1778
    %v1781 = vtanh.pop %v1780
    %1783 = vrot.lane.b32.xlu0 %v1781, 64
    %v1784 = vpop.permute.xlu0 %1783
    %v1786 = vmul.f32 %v1768, %v1784
    %v1788 = vrot.slane %v1676, 6
    %v1789 = vsel %vm212, %v1788, 0
    %1791 = vmatprep.subr.mxu0 %v61
    %1792 = vmatpush1.msra.mxu0 %v60
    %1793 = vmatprep.subr.mxu0 %v63
    %1794 = vmatpush1.msra.mxu0 %v62
    %1795 = vmatprep.subr.mxu0 %v65
    %1796 = vmatpush1.msra.mxu0 %v64
    %1797 = vmatprep.subr.mxu0 %v67
    %1798 = vmatpush1.msra.mxu0 %v66
    %1799 = vmatprep.subr.mxu0 %v69
    %1800 = vmatpush1.msra.mxu0 %v68
    %1801 = vmatprep.subr.mxu0 %v71
    %1802 = vmatpush1.msra.mxu0 %v70
    %1803 = vmatprep.subr.mxu0 %v73
    %1804 = vmatpush1.msra.mxu0 %v72
    %1805 = vmatprep.subr.mxu0 %v75
    %1806 = vmatpush1.msra.mxu0 %v74
    %1807 = vmatprep.subr.mxu0 0.0
    %1808 = vmatpush1.msra.mxu0 0.0
    %1809 = vmatprep.subr.mxu0 0.0
    %1810 = vmatpush1.msra.mxu0 0.0
    %1811 = vmatprep.subr.mxu0 0.0
    %1812 = vmatpush1.msra.mxu0 0.0
    %1813 = vmatprep.subr.mxu0 0.0
    %1814 = vmatpush1.msra.mxu0 0.0
    %1815 = vmatprep.subr.mxu0 0.0
    %1816 = vmatpush1.msra.mxu0 0.0
    %1817 = vmatprep.subr.mxu0 0.0
    %1818 = vmatpush1.msra.mxu0 0.0
    %1819 = vmatprep.subr.mxu0 0.0
    %1820 = vmatpush1.msra.mxu0 0.0
    %1821 = vmatprep.subr.mxu0 0.0
    %1822 = vmatpush1.msra.mxu0 0.0
    %1823 = vmatprep.subr.mxu0 0.0
    %1824 = vmatpush1.msra.mxu0 0.0
    %1825 = vmatprep.subr.mxu0 0.0
    %1826 = vmatpush1.msra.mxu0 0.0
    %1827 = vmatprep.subr.mxu0 0.0
    %1828 = vmatpush1.msra.mxu0 0.0
    %1829 = vmatprep.subr.mxu0 0.0
    %1830 = vmatpush1.msra.mxu0 0.0
    %1831 = vmatprep.subr.mxu0 0.0
    %1832 = vmatpush1.msra.mxu0 0.0
    %1833 = vmatprep.subr.mxu0 0.0
    %1834 = vmatpush1.msra.mxu0 0.0
    %1835 = vmatprep.subr.mxu0 0.0
    %1836 = vmatpush1.msra.mxu0 0.0
    %1837 = vmatprep.subr.mxu0 0.0
    %1838 = vmatpush1.msra.mxu0 0.0
    %1839 = vmatprep.subr.mxu0 0.0
    %1840 = vmatpush1.msra.mxu0 0.0
    %1841 = vmatprep.subr.mxu0 0.0
    %1842 = vmatpush1.msra.mxu0 0.0
    %1843 = vmatprep.subr.mxu0 0.0
    %1844 = vmatpush1.msra.mxu0 0.0
    %1845 = vmatprep.subr.mxu0 0.0
    %1846 = vmatpush1.msra.mxu0 0.0
    %1847 = vmatprep.subr.mxu0 0.0
    %1848 = vmatpush1.msra.mxu0 0.0
    %1849 = vmatprep.subr.mxu0 0.0
    %1850 = vmatpush1.msra.mxu0 0.0
    %1851 = vmatprep.subr.mxu0 0.0
    %1852 = vmatpush1.msra.mxu0 0.0
    %1853 = vmatprep.subr.mxu0 0.0
    %1854 = vmatpush1.msra.mxu0 0.0
    %1855 = vmatprep.mubr.f32.mxu0 0.0
    %1856 = vmatmul.mubr.f32.gmra.mrb[0].mxu0 %v1789
    %v1857 = vpop.f32.mrb[0].mxu0
    %v1858 = vadd.f32 0.0, %v1857
    %v1859 = vpop.f32.mrb[0].mxu0
    %v1860 = vadd.f32 0.0, %v1859
    %1861 = vdwg.mxu0
    %v1864 = vrot.slane %v1858, 1
    %v1865 = vrot.slane %v1860, 1
    %v1868 = vadd.f32 %v208, %v1864
    %v1869 = vadd.f32 %v210, %v1865
    %v1870 = vxor.u32 %v1868, 2147483648
    %v1871 = vxor.u32 %v1869, 2147483648
    %v1872 = vmul.f32 %v1870, 1.442695
    %v1873 = vpow.pop %v1872
    %v1874 = vmul.f32 %v1871, 1.442695
    %v1875 = vpow.pop %v1874
    %v1876 = vadd.f32 %v1873, 1.0
    %v1877 = vadd.f32 %v1875, 1.0
    %v1878 = vrcp.pop %v1876
    %v1879 = vmul.f32 1.0, %v1878
    %v1880 = vrcp.pop %v1877
    %v1881 = vmul.f32 1.0, %v1880
    %v1882 = vtanh.pop %v1869
    %v1884 = vrot.slane %v1670, 7
    %v1886 = vmul.f32 %v1879, %v1884
    %1888 = vrot.lane.b32.xlu0 %v1882, 64
    %v1889 = vpop.permute.xlu0 %1888
    %v1891 = vmul.f32 %v1879, %v1889
    %1893 = vrot.lane.b32.xlu0 %v1891, 64
    %v1894 = vpop.permute.xlu0 %1893
    %v1896 = vadd.f32 %v1886, %v1894
    %v1897 = vtanh.pop %v1896
    %1899 = vrot.lane.b32.xlu0 %v1897, 64
    %v1900 = vpop.permute.xlu0 %1899
    %v1902 = vmul.f32 %v1881, %v1900
    %v1904 = vrot.slane %v1786, 1
    %1905 = vrot.lane.b32.xlu0 %v1904, 64
    %v1906 = vpop.permute.xlu0 %1905
    %v1908 = vsel %vm212, %v1902, %v1906
    %v1910 = vrot.slane %v1908, 7
    %1912 = vmatprep.subr.mxu0 %v77
    %1913 = vmatpush1.msra.mxu0 %v76
    %1914 = vmatprep.subr.mxu0 %v79
    %1915 = vmatpush1.msra.mxu0 %v78
    %1916 = vmatprep.subr.mxu0 %v81
    %1917 = vmatpush1.msra.mxu0 %v80
    %1918 = vmatprep.subr.mxu0 %v83
    %1919 = vmatpush1.msra.mxu0 %v82
    %1920 = vmatprep.subr.mxu0 %v85
    %1921 = vmatpush1.msra.mxu0 %v84
    %1922 = vmatprep.subr.mxu0 %v87
    %1923 = vmatpush1.msra.mxu0 %v86
    %1924 = vmatprep.subr.mxu0 %v89
    %1925 = vmatpush1.msra.mxu0 %v88
    %1926 = vmatprep.subr.mxu0 %v91
    %1927 = vmatpush1.msra.mxu0 %v90
    %1928 = vmatprep.subr.mxu0 %v93
    %1929 = vmatpush1.msra.mxu0 %v92
    %1930 = vmatprep.subr.mxu0 %v95
    %1931 = vmatpush1.msra.mxu0 %v94
    %1932 = vmatprep.subr.mxu0 %v97
    %1933 = vmatpush1.msra.mxu0 %v96
    %1934 = vmatprep.subr.mxu0 %v99
    %1935 = vmatpush1.msra.mxu0 %v98
    %1936 = vmatprep.subr.mxu0 %v101
    %1937 = vmatpush1.msra.mxu0 %v100
    %1938 = vmatprep.subr.mxu0 %v103
    %1939 = vmatpush1.msra.mxu0 %v102
    %1940 = vmatprep.subr.mxu0 %v105
    %1941 = vmatpush1.msra.mxu0 %v104
    %1942 = vmatprep.subr.mxu0 %v107
    %1943 = vmatpush1.msra.mxu0 %v106
    %1944 = vmatprep.subr.mxu0 0.0
    %1945 = vmatpush1.msra.mxu0 0.0
    %1946 = vmatprep.subr.mxu0 0.0
    %1947 = vmatpush1.msra.mxu0 0.0
    %1948 = vmatprep.subr.mxu0 0.0
    %1949 = vmatpush1.msra.mxu0 0.0
    %1950 = vmatprep.subr.mxu0 0.0
    %1951 = vmatpush1.msra.mxu0 0.0
    %1952 = vmatprep.subr.mxu0 0.0
    %1953 = vmatpush1.msra.mxu0 0.0
    %1954 = vmatprep.subr.mxu0 0.0
    %1955 = vmatpush1.msra.mxu0 0.0
    %1956 = vmatprep.subr.mxu0 0.0
    %1957 = vmatpush1.msra.mxu0 0.0
    %1958 = vmatprep.subr.mxu0 0.0
    %1959 = vmatpush1.msra.mxu0 0.0
    %1960 = vmatprep.subr.mxu0 0.0
    %1961 = vmatpush1.msra.mxu0 0.0
    %1962 = vmatprep.subr.mxu0 0.0
    %1963 = vmatpush1.msra.mxu0 0.0
    %1964 = vmatprep.subr.mxu0 0.0
    %1965 = vmatpush1.msra.mxu0 0.0
    %1966 = vmatprep.subr.mxu0 0.0
    %1967 = vmatpush1.msra.mxu0 0.0
    %1968 = vmatprep.subr.mxu0 0.0
    %1969 = vmatpush1.msra.mxu0 0.0
    %1970 = vmatprep.subr.mxu0 0.0
    %1971 = vmatpush1.msra.mxu0 0.0
    %1972 = vmatprep.subr.mxu0 0.0
    %1973 = vmatpush1.msra.mxu0 0.0
    %1974 = vmatprep.subr.mxu0 0.0
    %1975 = vmatpush1.msra.mxu0 0.0
    %1976 = vmatprep.mubr.f32.mxu0 0.0
    %1977 = vmatmul.mubr.f32.gmra.mrb[0].mxu0 %v1910
    %v1978 = vpop.f32.mrb[0].mxu0
    %v1979 = vadd.f32 %v324, %v1978
    %v1980 = vpop.f32.mrb[0].mxu0
    %v1981 = vadd.f32 %v328, %v1980
    %1982 = vdwg.mxu0
    %v1983 = vxor.u32 %v1979, 2147483648
    %v1984 = vxor.u32 %v1981, 2147483648
    %v1985 = vmul.f32 %v1983, 1.442695
    %v1986 = vpow.pop %v1985
    %v1987 = vmul.f32 %v1984, 1.442695
    %v1988 = vpow.pop %v1987
    %v1989 = vadd.f32 %v1986, 1.0
    %v1990 = vadd.f32 %v1988, 1.0
    %v1991 = vrcp.pop %v1989
    %v1992 = vmul.f32 1.0, %v1991
    %v1993 = vrcp.pop %v1990
    %v1994 = vmul.f32 1.0, %v1993
    %v1995 = vtanh.pop %v1981
    %v1996 = vmul.f32 %v1992, %v1780
    %1998 = vrot.lane.b32.xlu0 %v1995, 64
    %v1999 = vpop.permute.xlu0 %1998
    %v2001 = vmul.f32 %v1992, %v1999
    %2003 = vrot.lane.b32.xlu0 %v2001, 64
    %v2004 = vpop.permute.xlu0 %2003
    %v2006 = vadd.f32 %v1996, %v2004
    %v2007 = vtanh.pop %v2006
    %2009 = vrot.lane.b32.xlu0 %v2007, 64
    %v2010 = vpop.permute.xlu0 %2009
    %v2012 = vmul.f32 %v1994, %v2010
    %v2013 = vld [vmem:[%s6] sm:$0xff]
    %v2014 = vld [vmem:[%s6 + $0x8] sm:$0xff]
    %v2015 = vld [vmem:[%s6 + $0x10] sm:$0xff]
    %v2016 = vld [vmem:[%s6 + $0x18] sm:$0xff]
    %v2017 = vld [vmem:[%s6 + $0x20] sm:$0xff]
    %v2018 = vld [vmem:[%s6 + $0x28] sm:$0xff]
    %v2019 = vld [vmem:[%s6 + $0x30] sm:$0xff]
    %v2020 = vld [vmem:[%s6 + $0x38] sm:$0xff]
    %v2021 = vld [vmem:[#allocation2] sm:$0x1]
    %v2023 = vsel %vm212, %v2012, 0
    %2025 = vmatprep.subr.mxu0 0.0
    %2026 = vmatpush1.msra.mxu0 %v2013
    %2027 = vmatprep.subr.mxu0 0.0
    %2028 = vmatpush1.msra.mxu0 %v2014
    %2029 = vmatprep.subr.mxu0 0.0
    %2030 = vmatpush1.msra.mxu0 %v2015
    %2031 = vmatprep.subr.mxu0 0.0
    %2032 = vmatpush1.msra.mxu0 %v2016
    %2033 = vmatprep.subr.mxu0 0.0
    %2034 = vmatpush1.msra.mxu0 %v2017
    %2035 = vmatprep.subr.mxu0 0.0
    %2036 = vmatpush1.msra.mxu0 %v2018
    %2037 = vmatprep.subr.mxu0 0.0
    %2038 = vmatpush1.msra.mxu0 %v2019
    %2039 = vmatprep.subr.mxu0 0.0
    %2040 = vmatpush1.msra.mxu0 %v2020
    %2041 = vmatprep.subr.mxu0 0.0
    %2042 = vmatpush1.msra.mxu0 0.0
    %2043 = vmatprep.subr.mxu0 0.0
    %2044 = vmatpush1.msra.mxu0 0.0
    %2045 = vmatprep.subr.mxu0 0.0
    %2046 = vmatpush1.msra.mxu0 0.0
    %2047 = vmatprep.subr.mxu0 0.0
    %2048 = vmatpush1.msra.mxu0 0.0
    %2049 = vmatprep.subr.mxu0 0.0
    %2050 = vmatpush1.msra.mxu0 0.0
    %2051 = vmatprep.subr.mxu0 0.0
    %2052 = vmatpush1.msra.mxu0 0.0
    %2053 = vmatprep.subr.mxu0 0.0
    %2054 = vmatpush1.msra.mxu0 0.0
    %2055 = vmatprep.subr.mxu0 0.0
    %2056 = vmatpush1.msra.mxu0 0.0
    %2057 = vmatprep.subr.mxu0 0.0
    %2058 = vmatpush1.msra.mxu0 0.0
    %2059 = vmatprep.subr.mxu0 0.0
    %2060 = vmatpush1.msra.mxu0 0.0
    %2061 = vmatprep.subr.mxu0 0.0
    %2062 = vmatpush1.msra.mxu0 0.0
    %2063 = vmatprep.subr.mxu0 0.0
    %2064 = vmatpush1.msra.mxu0 0.0
    %2065 = vmatprep.subr.mxu0 0.0
    %2066 = vmatpush1.msra.mxu0 0.0
    %2067 = vmatprep.subr.mxu0 0.0
    %2068 = vmatpush1.msra.mxu0 0.0
    %2069 = vmatprep.subr.mxu0 0.0
    %2070 = vmatpush1.msra.mxu0 0.0
    %2071 = vmatprep.subr.mxu0 0.0
    %2072 = vmatpush1.msra.mxu0 0.0
    %2073 = vmatprep.subr.mxu0 0.0
    %2074 = vmatpush1.msra.mxu0 0.0
    %2075 = vmatprep.subr.mxu0 0.0
    %2076 = vmatpush1.msra.mxu0 0.0
    %2077 = vmatprep.subr.mxu0 0.0
    %2078 = vmatpush1.msra.mxu0 0.0
    %2079 = vmatprep.subr.mxu0 0.0
    %2080 = vmatpush1.msra.mxu0 0.0
    %2081 = vmatprep.subr.mxu0 0.0
    %2082 = vmatpush1.msra.mxu0 0.0
    %2083 = vmatprep.subr.mxu0 0.0
    %2084 = vmatpush1.msra.mxu0 0.0
    %2085 = vmatprep.subr.mxu0 0.0
    %2086 = vmatpush1.msra.mxu0 0.0
    %2087 = vmatprep.subr.mxu0 0.0
    %2088 = vmatpush1.msra.mxu0 0.0
    %2089 = vmatprep.mubr.f32.mxu0 0.0
    %2090 = vmatmul.mubr.f32.gmra.mrb[0].mxu0 %v2023
    %v2091 = vpop.f32.mrb[0].mxu0
    %v2092 = vadd.f32 %v2021, %v2091
    %v2093 = vpop.f32.mrb[0].mxu0
    %2094 = vdwg.mxu0
    %vm2095 = vcmask 0
    %2096 = vst.msk [vmem:[#allocation8] sm:$0x1] %vm2095, %v2092
    // Predicated region
    $region42: #{tpu_custom_call.1} parent=1 // pred_check
      _
    $region43: #{tpu_custom_call.1} parent=1 // pred_check_branch
      %2098 = sbr.rel (0) target = $region45
    $region44: #{tpu_custom_call.1} parent=1 // pred_region
      %s2100 = ssub.s32 16, 16
      %2101 = vsyncadd [#allocation5], %s2100
      %s2103 = sshll.u32 [#allocation8], 4
      %s2104 = int_to_ptr.vmem [resolvable:$true] %s2103
      %2106 = dma.vmem_to_hbm [thread:$0]  %s2104, 16, %s8, [#allocation5]
    $region45: #{tpu_custom_call.1} parent=1 // pred_fallthru
      _
    // Predicated region
    $region46: #{tpu_custom_call.1} parent=1 // pred_check
      _
    $region47: #{tpu_custom_call.1} parent=1 // pred_check_branch
      %2108 = sbr.rel (0) target = $region49
    $region48: #{tpu_custom_call.1} parent=1 // pred_region
      %2109 = dma.done [#allocation5], 16
    $region49: #{tpu_custom_call.1} parent=1 // pred_fallthru
      _
    %2110 = vsyncpa [#allocation4], 1
    %2111 = vsyncpa [#allocation7], 1
    %2112 = vsyncpa [#allocation5], 1

</llo_original>
